<compile_context>
chip_gen: v6e
topology: v6e:2x2x1
jax: 0.10.0
libtpu: 0.0.40
codegen_flags: <defaults>
</compile_context>

<pallas_src>
import functools

import jax
import jax.numpy as jnp
from jax import lax
from jax.experimental import pallas as pl
from jax.experimental.pallas import tpu as pltpu


def _round_up(x, m):
    return (x + m - 1) // m * m


def _choose_bt(B, S, target_rows=1024, max_bt=8):
    """Batch-block size: largest divisor of B with bt*S <= target, bt <= max_bt,
    and grid length >= 2 when B >= 2 (keeps v7x's second TensorCore busy)."""
    cap = max(1, min(max_bt, max(1, target_rows // max(S, 1))))
    if B >= 2:
        cap = min(cap, max(1, B // 2))
    best = 1
    for d in range(1, min(cap, B) + 1):
        if B % d == 0:
            best = d
    return best


# ----------------------------------------------------------------------------
# Fused ConstGCN kernel: per batch-block
#   h = x @ [V_in|V_out|W_self|gates]        (bf16 MXU, f32 accumulate)
#   weighted-adjacency gather of neighbours + label biases (f32 MXU)
#   sigmoid gates * mask, degree sum, LayerNorm, sent mask, ReLU, sent mask
# ----------------------------------------------------------------------------
def _const_gcn_kernel(x_ref, w_ref, ints_ref, masks_ref, bin_ref, bout_ref,
                      gb_ref, o_ref, *, bt, S, U, Up, L, di, do):
    w = w_ref[...]                                # (D, Cp) bf16, resident
    b_in_tab = bin_ref[...]                       # (L, U+1) f32: [b_in | b_in_gate]
    b_out_tab = bout_ref[...]                     # (L, U+1) f32
    gamma = gb_ref[0:1, :]                        # (1, U)
    beta = gb_ref[1:2, :]                         # (1, U)

    iota_s = lax.broadcasted_iota(jnp.int32, (S, S), 1)
    iota_l = lax.broadcasted_iota(jnp.int32, (S, L), 1)

    for b in range(bt):                           # static unroll over the batch block
        xb = x_ref[b]                             # (S, D) bf16
        h = jnp.dot(xb, w, preferred_element_type=jnp.float32)   # (S, Cp) f32

        h_in = h[:, 0:U]                          # value segments are 128-aligned
        h_out = h[:, Up:Up + U]
        h_same = h[:, 2 * Up:2 * Up + U]
        g_in = h[:, 3 * Up:3 * Up + 1]            # (S, 1) gate logits (pre-bias)
        g_out = h[:, 3 * Up + 1:3 * Up + 2]
        g_loop = h[:, 3 * Up + 2:3 * Up + 3]

        ints = ints_ref[b]                        # (S, 2*(di+do)) int32
        masks = masks_ref[b]                      # (S, di+do+2) f32
        idx_in = ints[:, 0:di]
        lab_in = ints[:, di:2 * di]
        idx_out = ints[:, 2 * di:2 * di + do]
        lab_out = ints[:, 2 * di + do:2 * di + 2 * do]
        m_in = masks[:, 0:di]
        m_out = masks[:, di:di + do]
        m_loop = masks[:, di + do:di + do + 1]
        sent = masks[:, di + do + 1:di + do + 2]

        def arc_term(idx, lab, m, g_col, tab, h_seg, ndeg):
            # Build a weighted adjacency (S,S) and label-weight (S,L) matrix,
            # then gather-and-sum all degrees with two MXU matmuls instead of
            # materializing (S, ndeg, U) potentials.
            bv = tab[:, 0:U]                      # (L, U) value bias
            bg = tab[:, U:U + 1]                  # (L, 1) gate bias
            w_adj = jnp.zeros((S, S), jnp.float32)
            w_lab = jnp.zeros((S, L), jnp.float32)
            # TODO(synk): for degrees much larger than ~8, switch this static
            # unroll to lax.fori_loop(..., unroll=True) to bound vreg pressure.
            for d in range(ndeg):
                oh = jnp.where(idx[:, d:d + 1] == iota_s, 1.0, 0.0
                               ).astype(jnp.float32)            # (S, S)
                ohl = jnp.where(lab[:, d:d + 1] == iota_l, 1.0, 0.0
                                ).astype(jnp.float32)           # (S, L)
                gate = (jnp.dot(oh, g_col, preferred_element_type=jnp.float32)
                        + jnp.dot(ohl, bg, preferred_element_type=jnp.float32))
                p = jax.nn.sigmoid(gate) * m[:, d:d + 1]        # (S, 1)
                w_adj = w_adj + p * oh
                w_lab = w_lab + p * ohl
            return (jnp.dot(w_adj, h_seg, preferred_element_type=jnp.float32)
                    + jnp.dot(w_lab, bv, preferred_element_type=jnp.float32))

        acc = arc_term(idx_in, lab_in, m_in, g_in, b_in_tab, h_in, di)
        acc = acc + arc_term(idx_out, lab_out, m_out, g_out, b_out_tab, h_out, do)
        p_loop = jax.nn.sigmoid(g_loop) * m_loop                 # self loop (no bias)
        acc = acc + p_loop * h_same                              # (S, U) f32

        # LayerNorm (eps=1e-5, biased variance), sent mask, ReLU, sent mask again
        mean = jnp.mean(acc, axis=-1, keepdims=True)
        var = jnp.mean((acc - mean) ** 2, axis=-1, keepdims=True)
        y = (acc - mean) * lax.rsqrt(var + 1e-5)
        y = y * gamma + beta
        y = jnp.maximum(y * sent, 0.0)
        o_ref[b] = y * sent


# ----------------------------------------------------------------------------
# Parameter init (deterministic, mirrors shapes in ConstGCN.__init__)
# ----------------------------------------------------------------------------
def init_params(key, num_inputs, num_units, num_labels):
    ks = jax.random.split(key, 6)

    def xavier(k, shape):
        fan_in, fan_out = shape
        std = (2.0 / (fan_in + fan_out)) ** 0.5
        return std * jax.random.normal(k, shape, jnp.float32)

    return dict(
        V_in=xavier(ks[0], (num_inputs, num_units)),
        b_in=jnp.zeros((num_labels, num_units), jnp.float32),
        V_in_gate=xavier(ks[1], (num_inputs, 1)),
        b_in_gate=jnp.ones((num_labels, 1), jnp.float32),
        V_out=xavier(ks[2], (num_inputs, num_units)),
        b_out=jnp.zeros((num_labels, num_units), jnp.float32),
        V_out_gate=xavier(ks[3], (num_inputs, 1)),
        b_out_gate=jnp.ones((num_labels, 1), jnp.float32),
        W_self_loop=xavier(ks[4], (num_inputs, num_units)),
        W_self_loop_gate=xavier(ks[5], (num_inputs, 1)),
        ln_gamma=jnp.ones((num_units,), jnp.float32),
        ln_beta=jnp.zeros((num_units,), jnp.float32),
    )


# ----------------------------------------------------------------------------
# Forward pass wrapper
# ----------------------------------------------------------------------------
def const_gcn_forward(src, params, arc_in, arc_out, lab_in, lab_out,
                      mask_in, mask_out, mask_loop, sent_mask):
    S, B, D = src.shape
    U = params["V_in"].shape[1]
    L = params["b_in"].shape[0]
    N = B * S
    di = arc_in.shape[1] // N
    do = arc_out.shape[1] // N
    Up = _round_up(U, 128)                        # 128-aligned value segments
    Cp = 3 * Up + 128                             # + one lane tile for the 3 gates

    # (S,B,D) -> (B,S,D); dropout(p=0) is identity in eval mode; bf16 MXU input.
    x = jnp.transpose(src, (1, 0, 2)).astype(jnp.bfloat16)

    def padc(m, to):
        return jnp.pad(m, ((0, 0), (0, to - m.shape[1])))

    gates_w = jnp.concatenate([params["V_in_gate"], params["V_out_gate"],
                               params["W_self_loop_gate"]], axis=1)          # (D, 3)
    W = jnp.concatenate(
        [padc(params["V_in"], Up), padc(params["V_out"], Up),
         padc(params["W_self_loop"], Up), padc(gates_w, 128)],
        axis=1).astype(jnp.bfloat16)                                         # (D, Cp)

    b_in_tab = jnp.concatenate([params["b_in"], params["b_in_gate"]], axis=1)   # (L, U+1)
    b_out_tab = jnp.concatenate([params["b_out"], params["b_out_gate"]], axis=1)
    gb = jnp.stack([params["ln_gamma"], params["ln_beta"]], axis=0)             # (2, U)

    # TODO(synk): the fused in-kernel gather assumes arcs stay inside their
    # sentence (arc_tensor[0] equals the destination row's batch), which is how
    # ConstGCN inputs are built; cross-batch arcs would need a manual DMA gather.
    ints = jnp.concatenate(
        [arc_in[1].reshape(B, S, di), lab_in[0].reshape(B, S, di),
         arc_out[1].reshape(B, S, do), lab_out[0].reshape(B, S, do)],
        axis=2).astype(jnp.int32)                                   # (B, S, 2di+2do)
    masks = jnp.concatenate(
        [mask_in.reshape(B, S, di), mask_out.reshape(B, S, do),
         mask_loop.reshape(B, S, 1), sent_mask.reshape(B, S, 1)],
        axis=2).astype(jnp.float32)                                 # (B, S, di+do+2)

    bt = _choose_bt(B, S)
    grid = (B // bt,)

    kernel = functools.partial(_const_gcn_kernel, bt=bt, S=S, U=U, Up=Up,
                               L=L, di=di, do=do)

    # Rough per-step VMEM footprint (double-buffered streaming blocks + resident
    # weights/tables + in-kernel temporaries) -> explicit scoped-VMEM limit,
    # sized against v7x's 64 MiB per-core VMEM rather than a fixed 48 MiB.
    est = (2 * (bt * S * D * 2 + bt * S * ints.shape[2] * 4
                + bt * S * masks.shape[2] * 4 + bt * S * U * 4)
           + D * Cp * 2 + 2 * L * (U + 1) * 4 + 2 * U * 4
           + bt * (S * Cp * 4 + 4 * S * S * 4 + 4 * S * L * 4 + 3 * S * U * 4))
    vmem_limit = int(min(100 * 2 ** 20, max(16 * 2 ** 20, 2 * est)))

    out = pl.pallas_call(
        kernel,
        out_shape=jax.ShapeDtypeStruct((B, S, U), jnp.float32),
        grid=grid,
        in_specs=[
            pl.BlockSpec((bt, S, D), lambda i: (i, 0, 0)),              # x
            pl.BlockSpec((D, Cp), lambda i: (0, 0)),                    # fused weights
            pl.BlockSpec((bt, S, ints.shape[2]), lambda i: (i, 0, 0)),  # idx/labels
            pl.BlockSpec((bt, S, masks.shape[2]), lambda i: (i, 0, 0)), # masks+sent
            pl.BlockSpec((L, U + 1), lambda i: (0, 0)),                 # b_in|b_in_gate
            pl.BlockSpec((L, U + 1), lambda i: (0, 0)),                 # b_out|b_out_gate
            pl.BlockSpec((2, U), lambda i: (0, 0)),                     # gamma/beta
        ],
        out_specs=pl.BlockSpec((bt, S, U), lambda i: (i, 0, 0)),
        compiler_params=pltpu.CompilerParams(
            dimension_semantics=("parallel",),
            vmem_limit_bytes=vmem_limit),
    )(x, W, ints, masks, b_in_tab, b_out_tab, gb)
    return out                                                       # (B, S, U)


# ----------------------------------------------------------------------------
# Pure-JAX reference (mirrors only the kernel's bf16 projection matmul; all
# post-projection math is f32, exactly like the kernel; eval-mode semantics)
# ----------------------------------------------------------------------------
def reference_forward(src, params, arc_in, arc_out, lab_in, lab_out,
                      mask_in, mask_out, mask_loop, sent_mask):
    S, B, D = src.shape
    U = params["V_in"].shape[1]
    N = B * S
    x = jnp.transpose(src, (1, 0, 2)).reshape(N, D)

    W = jnp.concatenate(
        [params["V_in"], params["V_out"], params["W_self_loop"],
         params["V_in_gate"], params["V_out_gate"],
         params["W_self_loop_gate"]], axis=1)
    H = jnp.dot(x.astype(jnp.bfloat16), W.astype(jnp.bfloat16),
                preferred_element_type=jnp.float32)

    input_in = H[:, 0:U]
    input_out = H[:, U:2 * U]
    same = H[:, 2 * U:3 * U]
    in_gate_h = H[:, 3 * U:3 * U + 1]
    out_gate_h = H[:, 3 * U + 1:3 * U + 2]
    loop_gate_h = H[:, 3 * U + 2:3 * U + 3]

    idx_in = arc_in[0] * S + arc_in[1]
    idx_out = arc_out[0] * S + arc_out[1]
    di = idx_in.shape[0] // N
    do = idx_out.shape[0] // N

    in_ = (input_in[idx_in] + params["b_in"][lab_in[0]]).reshape(N, di, U)
    in_g = (in_gate_h[idx_in] + params["b_in_gate"][lab_in[0]]).reshape(N, di)
    out_ = (input_out[idx_out] + params["b_out"][lab_out[0]]).reshape(N, do, U)
    out_g = (out_gate_h[idx_out] + params["b_out_gate"][lab_out[0]]).reshape(N, do)

    pot = jnp.concatenate([in_, out_, same.reshape(N, 1, U)], axis=1)
    gates = jnp.concatenate([in_g, out_g, loop_gate_h.reshape(N, 1)], axis=1)
    mask_soft = jnp.concatenate([mask_in, mask_out, mask_loop], axis=1)

    probs = jax.nn.sigmoid(gates) * mask_soft
    s = jnp.sum(pot * probs[:, :, None], axis=1)

    mean = jnp.mean(s, axis=-1, keepdims=True)
    var = jnp.mean((s - mean) ** 2, axis=-1, keepdims=True)
    y = (s - mean) / jnp.sqrt(var + 1e-5)
    y = y * params["ln_gamma"][None, :] + params["ln_beta"][None, :]
    sent = sent_mask.reshape(N, 1)
    y = jnp.maximum(y * sent, 0.0)
    return (y.reshape(B, S, U)) * sent_mask[:, :, None]


# ----------------------------------------------------------------------------
if __name__ == "__main__":
    B, S = 2, 8                 # batch, seq_len
    D = 64                      # num_inputs
    U = 128                     # num_units (lane-dense)
    L = 4                       # num_labels
    degr_in, degr_out = 2, 2
    N = B * S

    key = jax.random.PRNGKey(0)
    k_src, k_p, k_ai, k_ao, k_li, k_lo, k_mi, k_mo, k_sm = jax.random.split(key, 9)

    params = init_params(k_p, D, U, L)

    src = jax.random.normal(k_src, (S, B, D), jnp.float32)   # batch_first=False

    # arc tensors: [0] = batch index of the row, [1] = seq index of the neighbour
    arc_in = jnp.stack([
        jnp.repeat(jnp.arange(B, dtype=jnp.int32), S * degr_in),
        jax.random.randint(k_ai, (N * degr_in,), 0, S, jnp.int32),
    ])
    arc_out = jnp.stack([
        jnp.repeat(jnp.arange(B, dtype=jnp.int32), S * degr_out),
        jax.random.randint(k_ao, (N * degr_out,), 0, S, jnp.int32),
    ])
    lab_in = jax.random.randint(k_li, (1, N * degr_in), 0, L, jnp.int32)
    lab_out = jax.random.randint(k_lo, (1, N * degr_out), 0, L, jnp.int32)

    mask_in = (jax.random.uniform(k_mi, (N, degr_in)) > 0.2).astype(jnp.float32)
    mask_out = (jax.random.uniform(k_mo, (N, degr_out)) > 0.2).astype(jnp.float32)
    mask_loop = jnp.ones((N, 1), jnp.float32)
    sent_mask = (jax.random.uniform(k_sm, (B, S)) > 0.1).astype(jnp.float32)

    out = const_gcn_forward(src, params, arc_in, arc_out, lab_in, lab_out,
                            mask_in, mask_out, mask_loop, sent_mask)
    out = jax.block_until_ready(out)

    ref = reference_forward(src, params, arc_in, arc_out, lab_in, lab_out,
                            mask_in, mask_out, mask_loop, sent_mask)
    assert out.shape == (B, S, U)
    assert jnp.allclose(out, ref, atol=2e-3, rtol=2e-3)
    print("KERNEL_OK")
</pallas_src>

<mosaic_0001>
module attributes {stable_mosaic.version = 11 : i64} {
  func.func @_const_gcn_kernel(%arg0: i32, %arg1: memref<1x8x64xbf16, #tpu.memory_space<vmem>>, %arg2: memref<64x512xbf16, #tpu.memory_space<vmem>>, %arg3: memref<1x8x8xi32, #tpu.memory_space<vmem>>, %arg4: memref<1x8x6xf32, #tpu.memory_space<vmem>>, %arg5: memref<4x129xf32, #tpu.memory_space<vmem>>, %arg6: memref<4x129xf32, #tpu.memory_space<vmem>>, %arg7: memref<2x128xf32, #tpu.memory_space<vmem>>, %arg8: memref<1x8x128xf32, #tpu.memory_space<vmem>>) attributes {dimension_semantics = [#tpu.dimension_semantics<parallel>], iteration_bounds = array<i64: 2>, scalar_prefetch = 0 : i64, scratch_operands = 0 : i64, tpu.core_type = #tpu.core_type<tc>, window_params = [{transform_indices = @transform_0, window_bounds = array<i64: 1, 8, 64>}, {pipeline_mode = #tpu.pipeline_mode<synchronous>, transform_indices = @transform_1, window_bounds = array<i64: 64, 512>}, {transform_indices = @transform_2, window_bounds = array<i64: 1, 8, 8>}, {transform_indices = @transform_3, window_bounds = array<i64: 1, 8, 6>}, {pipeline_mode = #tpu.pipeline_mode<synchronous>, transform_indices = @transform_4, window_bounds = array<i64: 4, 129>}, {pipeline_mode = #tpu.pipeline_mode<synchronous>, transform_indices = @transform_5, window_bounds = array<i64: 4, 129>}, {pipeline_mode = #tpu.pipeline_mode<synchronous>, transform_indices = @transform_6, window_bounds = array<i64: 2, 128>}, {transform_indices = @transform_7, window_bounds = array<i64: 1, 8, 128>}]} {
    %c0 = arith.constant 0 : index
    %c0_0 = arith.constant 0 : index
    %0 = vector.load %arg2[%c0, %c0_0] : memref<64x512xbf16, #tpu.memory_space<vmem>>, vector<64x512xbf16>
    %c0_1 = arith.constant 0 : index
    %c0_2 = arith.constant 0 : index
    %1 = vector.load %arg5[%c0_1, %c0_2] : memref<4x129xf32, #tpu.memory_space<vmem>>, vector<4x129xf32>
    %c0_3 = arith.constant 0 : index
    %c0_4 = arith.constant 0 : index
    %2 = vector.load %arg6[%c0_3, %c0_4] : memref<4x129xf32, #tpu.memory_space<vmem>>, vector<4x129xf32>
    %c0_5 = arith.constant 0 : index
    %c0_6 = arith.constant 0 : index
    %3 = vector.load %arg7[%c0_5, %c0_6] : memref<2x128xf32, #tpu.memory_space<vmem>>, vector<1x128xf32>
    %c1 = arith.constant 1 : index
    %c0_7 = arith.constant 0 : index
    %4 = vector.load %arg7[%c1, %c0_7] : memref<2x128xf32, #tpu.memory_space<vmem>>, vector<1x128xf32>
    %5 = tpu.iota {dimensions = array<i32: 1>} : vector<8x8xi32>
    %6 = tpu.iota {dimensions = array<i32: 1>} : vector<8x4xi32>
    %c0_8 = arith.constant 0 : index
    %c0_9 = arith.constant 0 : index
    %c0_10 = arith.constant 0 : index
    %7 = vector.load %arg1[%c0_8, %c0_9, %c0_10] : memref<1x8x64xbf16, #tpu.memory_space<vmem>>, vector<1x8x64xbf16>
    %8 = vector.shape_cast %7 : vector<1x8x64xbf16> to vector<8x64xbf16>
    %cst = arith.constant dense<0.000000e+00> : vector<8x512xf32>
    %9 = tpu.matmul %8, %0, %cst {dimension_numbers = #tpu.dot_dimension_numbers<[1], [0], [0], [1], [0, 0, 1, 1], [], []>} : vector<8x64xbf16>, vector<64x512xbf16>, vector<8x512xf32> -> vector<8x512xf32>
    %10 = vector.extract_strided_slice %9 {offsets = [0, 0], sizes = [8, 128], strides = [1, 1]} : vector<8x512xf32> to vector<8x128xf32>
    %11 = vector.extract_strided_slice %9 {offsets = [0, 128], sizes = [8, 128], strides = [1, 1]} : vector<8x512xf32> to vector<8x128xf32>
    %12 = vector.extract_strided_slice %9 {offsets = [0, 256], sizes = [8, 128], strides = [1, 1]} : vector<8x512xf32> to vector<8x128xf32>
    %13 = vector.extract_strided_slice %9 {offsets = [0, 384], sizes = [8, 1], strides = [1, 1]} : vector<8x512xf32> to vector<8x1xf32>
    %14 = vector.extract_strided_slice %9 {offsets = [0, 385], sizes = [8, 1], strides = [1, 1]} : vector<8x512xf32> to vector<8x1xf32>
    %15 = vector.extract_strided_slice %9 {offsets = [0, 386], sizes = [8, 1], strides = [1, 1]} : vector<8x512xf32> to vector<8x1xf32>
    %c0_11 = arith.constant 0 : index
    %c0_12 = arith.constant 0 : index
    %c0_13 = arith.constant 0 : index
    %16 = vector.load %arg3[%c0_11, %c0_12, %c0_13] : memref<1x8x8xi32, #tpu.memory_space<vmem>>, vector<1x8x8xi32>
    %17 = vector.shape_cast %16 : vector<1x8x8xi32> to vector<8x8xi32>
    %c0_14 = arith.constant 0 : index
    %c0_15 = arith.constant 0 : index
    %c0_16 = arith.constant 0 : index
    %18 = vector.load %arg4[%c0_14, %c0_15, %c0_16] : memref<1x8x6xf32, #tpu.memory_space<vmem>>, vector<1x8x6xf32>
    %19 = vector.shape_cast %18 : vector<1x8x6xf32> to vector<8x6xf32>
    %20 = vector.extract_strided_slice %17 {offsets = [0, 0], sizes = [8, 2], strides = [1, 1]} : vector<8x8xi32> to vector<8x2xi32>
    %21 = vector.extract_strided_slice %17 {offsets = [0, 2], sizes = [8, 2], strides = [1, 1]} : vector<8x8xi32> to vector<8x2xi32>
    %22 = vector.extract_strided_slice %17 {offsets = [0, 4], sizes = [8, 2], strides = [1, 1]} : vector<8x8xi32> to vector<8x2xi32>
    %23 = vector.extract_strided_slice %17 {offsets = [0, 6], sizes = [8, 2], strides = [1, 1]} : vector<8x8xi32> to vector<8x2xi32>
    %24 = vector.extract_strided_slice %19 {offsets = [0, 0], sizes = [8, 2], strides = [1, 1]} : vector<8x6xf32> to vector<8x2xf32>
    %25 = vector.extract_strided_slice %19 {offsets = [0, 2], sizes = [8, 2], strides = [1, 1]} : vector<8x6xf32> to vector<8x2xf32>
    %26 = vector.extract_strided_slice %19 {offsets = [0, 4], sizes = [8, 1], strides = [1, 1]} : vector<8x6xf32> to vector<8x1xf32>
    %27 = vector.extract_strided_slice %19 {offsets = [0, 5], sizes = [8, 1], strides = [1, 1]} : vector<8x6xf32> to vector<8x1xf32>
    %28 = vector.extract_strided_slice %1 {offsets = [0, 0], sizes = [4, 128], strides = [1, 1]} : vector<4x129xf32> to vector<4x128xf32>
    %29 = vector.extract_strided_slice %1 {offsets = [0, 128], sizes = [4, 1], strides = [1, 1]} : vector<4x129xf32> to vector<4x1xf32>
    %cst_17 = arith.constant 0.000000e+00 : f32
    %30 = vector.broadcast %cst_17 : f32 to vector<8x8xf32>
    %cst_18 = arith.constant 0.000000e+00 : f32
    %31 = vector.broadcast %cst_18 : f32 to vector<8x4xf32>
    %32 = vector.extract_strided_slice %20 {offsets = [0, 0], sizes = [8, 1], strides = [1, 1]} : vector<8x2xi32> to vector<8x1xi32>
    %33 = vector.broadcast %32 : vector<8x1xi32> to vector<8x8xi32>
    %34 = arith.cmpi eq, %33, %5 : vector<8x8xi32>
    %cst_19 = arith.constant 1.000000e+00 : f32
    %cst_20 = arith.constant 0.000000e+00 : f32
    %35 = vector.broadcast %cst_19 : f32 to vector<8x8xf32>
    %36 = vector.broadcast %cst_20 : f32 to vector<8x8xf32>
    %37 = arith.select %34, %35, %36 : vector<8x8xi1>, vector<8x8xf32>
    %38 = vector.extract_strided_slice %21 {offsets = [0, 0], sizes = [8, 1], strides = [1, 1]} : vector<8x2xi32> to vector<8x1xi32>
    %39 = vector.broadcast %38 : vector<8x1xi32> to vector<8x4xi32>
    %40 = arith.cmpi eq, %39, %6 : vector<8x4xi32>
    %cst_21 = arith.constant 1.000000e+00 : f32
    %cst_22 = arith.constant 0.000000e+00 : f32
    %41 = vector.broadcast %cst_21 : f32 to vector<8x4xf32>
    %42 = vector.broadcast %cst_22 : f32 to vector<8x4xf32>
    %43 = arith.select %40, %41, %42 : vector<8x4xi1>, vector<8x4xf32>
    %cst_23 = arith.constant dense<0.000000e+00> : vector<8x1xf32>
    %44 = tpu.matmul %37, %13, %cst_23 {dimension_numbers = #tpu.dot_dimension_numbers<[1], [0], [0], [1], [0, 0, 1, 1], [], []>} : vector<8x8xf32>, vector<8x1xf32>, vector<8x1xf32> -> vector<8x1xf32>
    %cst_24 = arith.constant dense<0.000000e+00> : vector<8x1xf32>
    %45 = tpu.matmul %43, %29, %cst_24 {dimension_numbers = #tpu.dot_dimension_numbers<[1], [0], [0], [1], [0, 0, 1, 1], [], []>} : vector<8x4xf32>, vector<4x1xf32>, vector<8x1xf32> -> vector<8x1xf32>
    %46 = arith.addf %44, %45 : vector<8x1xf32>
    %47 = arith.negf %46 : vector<8x1xf32>
    %48 = math.exp %47 : vector<8x1xf32>
    %cst_25 = arith.constant 1.000000e+00 : f32
    %49 = vector.broadcast %cst_25 : f32 to vector<8x1xf32>
    %50 = arith.addf %49, %48 : vector<8x1xf32>
    %51 = arith.divf %49, %50 : vector<8x1xf32>
    %52 = vector.extract_strided_slice %24 {offsets = [0, 0], sizes = [8, 1], strides = [1, 1]} : vector<8x2xf32> to vector<8x1xf32>
    %53 = arith.mulf %51, %52 : vector<8x1xf32>
    %54 = vector.broadcast %53 : vector<8x1xf32> to vector<8x8xf32>
    %55 = arith.mulf %54, %37 : vector<8x8xf32>
    %56 = arith.addf %30, %55 : vector<8x8xf32>
    %57 = vector.broadcast %53 : vector<8x1xf32> to vector<8x4xf32>
    %58 = arith.mulf %57, %43 : vector<8x4xf32>
    %59 = arith.addf %31, %58 : vector<8x4xf32>
    %60 = vector.extract_strided_slice %20 {offsets = [0, 1], sizes = [8, 1], strides = [1, 1]} : vector<8x2xi32> to vector<8x1xi32>
    %61 = vector.broadcast %60 : vector<8x1xi32> to vector<8x8xi32>
    %62 = arith.cmpi eq, %61, %5 : vector<8x8xi32>
    %cst_26 = arith.constant 1.000000e+00 : f32
    %cst_27 = arith.constant 0.000000e+00 : f32
    %63 = vector.broadcast %cst_26 : f32 to vector<8x8xf32>
    %64 = vector.broadcast %cst_27 : f32 to vector<8x8xf32>
    %65 = arith.select %62, %63, %64 : vector<8x8xi1>, vector<8x8xf32>
    %66 = vector.extract_strided_slice %21 {offsets = [0, 1], sizes = [8, 1], strides = [1, 1]} : vector<8x2xi32> to vector<8x1xi32>
    %67 = vector.broadcast %66 : vector<8x1xi32> to vector<8x4xi32>
    %68 = arith.cmpi eq, %67, %6 : vector<8x4xi32>
    %cst_28 = arith.constant 1.000000e+00 : f32
    %cst_29 = arith.constant 0.000000e+00 : f32
    %69 = vector.broadcast %cst_28 : f32 to vector<8x4xf32>
    %70 = vector.broadcast %cst_29 : f32 to vector<8x4xf32>
    %71 = arith.select %68, %69, %70 : vector<8x4xi1>, vector<8x4xf32>
    %cst_30 = arith.constant dense<0.000000e+00> : vector<8x1xf32>
    %72 = tpu.matmul %65, %13, %cst_30 {dimension_numbers = #tpu.dot_dimension_numbers<[1], [0], [0], [1], [0, 0, 1, 1], [], []>} : vector<8x8xf32>, vector<8x1xf32>, vector<8x1xf32> -> vector<8x1xf32>
    %cst_31 = arith.constant dense<0.000000e+00> : vector<8x1xf32>
    %73 = tpu.matmul %71, %29, %cst_31 {dimension_numbers = #tpu.dot_dimension_numbers<[1], [0], [0], [1], [0, 0, 1, 1], [], []>} : vector<8x4xf32>, vector<4x1xf32>, vector<8x1xf32> -> vector<8x1xf32>
    %74 = arith.addf %72, %73 : vector<8x1xf32>
    %75 = arith.negf %74 : vector<8x1xf32>
    %76 = math.exp %75 : vector<8x1xf32>
    %cst_32 = arith.constant 1.000000e+00 : f32
    %77 = vector.broadcast %cst_32 : f32 to vector<8x1xf32>
    %78 = arith.addf %77, %76 : vector<8x1xf32>
    %79 = arith.divf %77, %78 : vector<8x1xf32>
    %80 = vector.extract_strided_slice %24 {offsets = [0, 1], sizes = [8, 1], strides = [1, 1]} : vector<8x2xf32> to vector<8x1xf32>
    %81 = arith.mulf %79, %80 : vector<8x1xf32>
    %82 = vector.broadcast %81 : vector<8x1xf32> to vector<8x8xf32>
    %83 = arith.mulf %82, %65 : vector<8x8xf32>
    %84 = arith.addf %56, %83 : vector<8x8xf32>
    %85 = vector.broadcast %81 : vector<8x1xf32> to vector<8x4xf32>
    %86 = arith.mulf %85, %71 : vector<8x4xf32>
    %87 = arith.addf %59, %86 : vector<8x4xf32>
    %cst_33 = arith.constant dense<0.000000e+00> : vector<8x128xf32>
    %88 = tpu.matmul %84, %10, %cst_33 {dimension_numbers = #tpu.dot_dimension_numbers<[1], [0], [0], [1], [0, 0, 1, 1], [], []>} : vector<8x8xf32>, vector<8x128xf32>, vector<8x128xf32> -> vector<8x128xf32>
    %cst_34 = arith.constant dense<0.000000e+00> : vector<8x128xf32>
    %89 = tpu.matmul %87, %28, %cst_34 {dimension_numbers = #tpu.dot_dimension_numbers<[1], [0], [0], [1], [0, 0, 1, 1], [], []>} : vector<8x4xf32>, vector<4x128xf32>, vector<8x128xf32> -> vector<8x128xf32>
    %90 = arith.addf %88, %89 : vector<8x128xf32>
    %91 = vector.extract_strided_slice %2 {offsets = [0, 0], sizes = [4, 128], strides = [1, 1]} : vector<4x129xf32> to vector<4x128xf32>
    %92 = vector.extract_strided_slice %2 {offsets = [0, 128], sizes = [4, 1], strides = [1, 1]} : vector<4x129xf32> to vector<4x1xf32>
    %cst_35 = arith.constant 0.000000e+00 : f32
    %93 = vector.broadcast %cst_35 : f32 to vector<8x8xf32>
    %cst_36 = arith.constant 0.000000e+00 : f32
    %94 = vector.broadcast %cst_36 : f32 to vector<8x4xf32>
    %95 = vector.extract_strided_slice %22 {offsets = [0, 0], sizes = [8, 1], strides = [1, 1]} : vector<8x2xi32> to vector<8x1xi32>
    %96 = vector.broadcast %95 : vector<8x1xi32> to vector<8x8xi32>
    %97 = arith.cmpi eq, %96, %5 : vector<8x8xi32>
    %cst_37 = arith.constant 1.000000e+00 : f32
    %cst_38 = arith.constant 0.000000e+00 : f32
    %98 = vector.broadcast %cst_37 : f32 to vector<8x8xf32>
    %99 = vector.broadcast %cst_38 : f32 to vector<8x8xf32>
    %100 = arith.select %97, %98, %99 : vector<8x8xi1>, vector<8x8xf32>
    %101 = vector.extract_strided_slice %23 {offsets = [0, 0], sizes = [8, 1], strides = [1, 1]} : vector<8x2xi32> to vector<8x1xi32>
    %102 = vector.broadcast %101 : vector<8x1xi32> to vector<8x4xi32>
    %103 = arith.cmpi eq, %102, %6 : vector<8x4xi32>
    %cst_39 = arith.constant 1.000000e+00 : f32
    %cst_40 = arith.constant 0.000000e+00 : f32
    %104 = vector.broadcast %cst_39 : f32 to vector<8x4xf32>
    %105 = vector.broadcast %cst_40 : f32 to vector<8x4xf32>
    %106 = arith.select %103, %104, %105 : vector<8x4xi1>, vector<8x4xf32>
    %cst_41 = arith.constant dense<0.000000e+00> : vector<8x1xf32>
    %107 = tpu.matmul %100, %14, %cst_41 {dimension_numbers = #tpu.dot_dimension_numbers<[1], [0], [0], [1], [0, 0, 1, 1], [], []>} : vector<8x8xf32>, vector<8x1xf32>, vector<8x1xf32> -> vector<8x1xf32>
    %cst_42 = arith.constant dense<0.000000e+00> : vector<8x1xf32>
    %108 = tpu.matmul %106, %92, %cst_42 {dimension_numbers = #tpu.dot_dimension_numbers<[1], [0], [0], [1], [0, 0, 1, 1], [], []>} : vector<8x4xf32>, vector<4x1xf32>, vector<8x1xf32> -> vector<8x1xf32>
    %109 = arith.addf %107, %108 : vector<8x1xf32>
    %110 = arith.negf %109 : vector<8x1xf32>
    %111 = math.exp %110 : vector<8x1xf32>
    %cst_43 = arith.constant 1.000000e+00 : f32
    %112 = vector.broadcast %cst_43 : f32 to vector<8x1xf32>
    %113 = arith.addf %112, %111 : vector<8x1xf32>
    %114 = arith.divf %112, %113 : vector<8x1xf32>
    %115 = vector.extract_strided_slice %25 {offsets = [0, 0], sizes = [8, 1], strides = [1, 1]} : vector<8x2xf32> to vector<8x1xf32>
    %116 = arith.mulf %114, %115 : vector<8x1xf32>
    %117 = vector.broadcast %116 : vector<8x1xf32> to vector<8x8xf32>
    %118 = arith.mulf %117, %100 : vector<8x8xf32>
    %119 = arith.addf %93, %118 : vector<8x8xf32>
    %120 = vector.broadcast %116 : vector<8x1xf32> to vector<8x4xf32>
    %121 = arith.mulf %120, %106 : vector<8x4xf32>
    %122 = arith.addf %94, %121 : vector<8x4xf32>
    %123 = vector.extract_strided_slice %22 {offsets = [0, 1], sizes = [8, 1], strides = [1, 1]} : vector<8x2xi32> to vector<8x1xi32>
    %124 = vector.broadcast %123 : vector<8x1xi32> to vector<8x8xi32>
    %125 = arith.cmpi eq, %124, %5 : vector<8x8xi32>
    %cst_44 = arith.constant 1.000000e+00 : f32
    %cst_45 = arith.constant 0.000000e+00 : f32
    %126 = vector.broadcast %cst_44 : f32 to vector<8x8xf32>
    %127 = vector.broadcast %cst_45 : f32 to vector<8x8xf32>
    %128 = arith.select %125, %126, %127 : vector<8x8xi1>, vector<8x8xf32>
    %129 = vector.extract_strided_slice %23 {offsets = [0, 1], sizes = [8, 1], strides = [1, 1]} : vector<8x2xi32> to vector<8x1xi32>
    %130 = vector.broadcast %129 : vector<8x1xi32> to vector<8x4xi32>
    %131 = arith.cmpi eq, %130, %6 : vector<8x4xi32>
    %cst_46 = arith.constant 1.000000e+00 : f32
    %cst_47 = arith.constant 0.000000e+00 : f32
    %132 = vector.broadcast %cst_46 : f32 to vector<8x4xf32>
    %133 = vector.broadcast %cst_47 : f32 to vector<8x4xf32>
    %134 = arith.select %131, %132, %133 : vector<8x4xi1>, vector<8x4xf32>
    %cst_48 = arith.constant dense<0.000000e+00> : vector<8x1xf32>
    %135 = tpu.matmul %128, %14, %cst_48 {dimension_numbers = #tpu.dot_dimension_numbers<[1], [0], [0], [1], [0, 0, 1, 1], [], []>} : vector<8x8xf32>, vector<8x1xf32>, vector<8x1xf32> -> vector<8x1xf32>
    %cst_49 = arith.constant dense<0.000000e+00> : vector<8x1xf32>
    %136 = tpu.matmul %134, %92, %cst_49 {dimension_numbers = #tpu.dot_dimension_numbers<[1], [0], [0], [1], [0, 0, 1, 1], [], []>} : vector<8x4xf32>, vector<4x1xf32>, vector<8x1xf32> -> vector<8x1xf32>
    %137 = arith.addf %135, %136 : vector<8x1xf32>
    %138 = arith.negf %137 : vector<8x1xf32>
    %139 = math.exp %138 : vector<8x1xf32>
    %cst_50 = arith.constant 1.000000e+00 : f32
    %140 = vector.broadcast %cst_50 : f32 to vector<8x1xf32>
    %141 = arith.addf %140, %139 : vector<8x1xf32>
    %142 = arith.divf %140, %141 : vector<8x1xf32>
    %143 = vector.extract_strided_slice %25 {offsets = [0, 1], sizes = [8, 1], strides = [1, 1]} : vector<8x2xf32> to vector<8x1xf32>
    %144 = arith.mulf %142, %143 : vector<8x1xf32>
    %145 = vector.broadcast %144 : vector<8x1xf32> to vector<8x8xf32>
    %146 = arith.mulf %145, %128 : vector<8x8xf32>
    %147 = arith.addf %119, %146 : vector<8x8xf32>
    %148 = vector.broadcast %144 : vector<8x1xf32> to vector<8x4xf32>
    %149 = arith.mulf %148, %134 : vector<8x4xf32>
    %150 = arith.addf %122, %149 : vector<8x4xf32>
    %cst_51 = arith.constant dense<0.000000e+00> : vector<8x128xf32>
    %151 = tpu.matmul %147, %11, %cst_51 {dimension_numbers = #tpu.dot_dimension_numbers<[1], [0], [0], [1], [0, 0, 1, 1], [], []>} : vector<8x8xf32>, vector<8x128xf32>, vector<8x128xf32> -> vector<8x128xf32>
    %cst_52 = arith.constant dense<0.000000e+00> : vector<8x128xf32>
    %152 = tpu.matmul %150, %91, %cst_52 {dimension_numbers = #tpu.dot_dimension_numbers<[1], [0], [0], [1], [0, 0, 1, 1], [], []>} : vector<8x4xf32>, vector<4x128xf32>, vector<8x128xf32> -> vector<8x128xf32>
    %153 = arith.addf %151, %152 : vector<8x128xf32>
    %154 = arith.addf %90, %153 : vector<8x128xf32>
    %155 = arith.negf %15 : vector<8x1xf32>
    %156 = math.exp %155 : vector<8x1xf32>
    %cst_53 = arith.constant 1.000000e+00 : f32
    %157 = vector.broadcast %cst_53 : f32 to vector<8x1xf32>
    %158 = arith.addf %157, %156 : vector<8x1xf32>
    %159 = arith.divf %157, %158 : vector<8x1xf32>
    %160 = arith.mulf %159, %26 : vector<8x1xf32>
    %161 = vector.broadcast %160 : vector<8x1xf32> to vector<8x128xf32>
    %162 = arith.mulf %161, %12 : vector<8x128xf32>
    %163 = arith.addf %154, %162 : vector<8x128xf32>
    %cst_54 = arith.constant dense<0.000000e+00> : vector<8xf32>
    %164 = vector.multi_reduction <add>, %163, %cst_54 [1] : vector<8x128xf32> to vector<8xf32>
    %165 = vector.shape_cast %164 : vector<8xf32> to vector<8x1xf32>
    %cst_55 = arith.constant 1.280000e+02 : f32
    %166 = vector.broadcast %cst_55 : f32 to vector<8x1xf32>
    %167 = arith.divf %165, %166 : vector<8x1xf32>
    %168 = vector.broadcast %167 : vector<8x1xf32> to vector<8x128xf32>
    %169 = arith.subf %163, %168 : vector<8x128xf32>
    %170 = arith.mulf %169, %169 : vector<8x128xf32>
    %cst_56 = arith.constant dense<0.000000e+00> : vector<8xf32>
    %171 = vector.multi_reduction <add>, %170, %cst_56 [1] : vector<8x128xf32> to vector<8xf32>
    %172 = vector.shape_cast %171 : vector<8xf32> to vector<8x1xf32>
    %cst_57 = arith.constant 1.280000e+02 : f32
    %173 = vector.broadcast %cst_57 : f32 to vector<8x1xf32>
    %174 = arith.divf %172, %173 : vector<8x1xf32>
    %175 = vector.broadcast %167 : vector<8x1xf32> to vector<8x128xf32>
    %176 = arith.subf %163, %175 : vector<8x128xf32>
    %cst_58 = arith.constant 9.99999974E-6 : f32
    %177 = vector.broadcast %cst_58 : f32 to vector<8x1xf32>
    %178 = arith.addf %174, %177 : vector<8x1xf32>
    %179 = math.rsqrt %178 : vector<8x1xf32>
    %180 = vector.broadcast %179 : vector<8x1xf32> to vector<8x128xf32>
    %181 = arith.mulf %176, %180 : vector<8x128xf32>
    %182 = vector.broadcast %3 : vector<1x128xf32> to vector<8x128xf32>
    %183 = arith.mulf %181, %182 : vector<8x128xf32>
    %184 = vector.broadcast %4 : vector<1x128xf32> to vector<8x128xf32>
    %185 = arith.addf %183, %184 : vector<8x128xf32>
    %186 = vector.broadcast %27 : vector<8x1xf32> to vector<8x128xf32>
    %187 = arith.mulf %185, %186 : vector<8x128xf32>
    %cst_59 = arith.constant 0.000000e+00 : f32
    %188 = vector.broadcast %cst_59 : f32 to vector<8x128xf32>
    %189 = arith.maximumf %187, %188 : vector<8x128xf32>
    %190 = vector.broadcast %27 : vector<8x1xf32> to vector<8x128xf32>
    %191 = arith.mulf %189, %190 : vector<8x128xf32>
    %c0_60 = arith.constant 0 : index
    %c0_61 = arith.constant 0 : index
    %c0_62 = arith.constant 0 : index
    %192 = vector.load %arg8[%c0_60, %c0_61, %c0_62] : memref<1x8x128xf32, #tpu.memory_space<vmem>>, vector<1x8x128xf32>
    %193 = vector.shape_cast %192 : vector<1x8x128xf32> to vector<8x128xf32>
    %194 = vector.shape_cast %191 : vector<8x128xf32> to vector<1x8x128xf32>
    tpu.vector_store %arg8[%c0_60, %c0_61, %c0_62], %194 {strides = array<i32>} : memref<1x8x128xf32, #tpu.memory_space<vmem>>, vector<1x8x128xf32>,
    return
  }
  func.func @transform_0(%arg0: i32) -> (i32, i32, i32) {
    %c0_i32 = arith.constant 0 : i32
    %c0_i32_0 = arith.constant 0 : i32
    %c0_i32_1 = arith.constant 0 : i32
    return %arg0, %c0_i32, %c0_i32_0 : i32, i32, i32
  }
  func.func @transform_1(%arg0: i32) -> (i32, i32) {
    %c0_i32 = arith.constant 0 : i32
    %c0_i32_0 = arith.constant 0 : i32
    %c0_i32_1 = arith.constant 0 : i32
    return %c0_i32, %c0_i32_0 : i32, i32
  }
  func.func @transform_2(%arg0: i32) -> (i32, i32, i32) {
    %c0_i32 = arith.constant 0 : i32
    %c0_i32_0 = arith.constant 0 : i32
    %c0_i32_1 = arith.constant 0 : i32
    return %arg0, %c0_i32, %c0_i32_0 : i32, i32, i32
  }
  func.func @transform_3(%arg0: i32) -> (i32, i32, i32) {
    %c0_i32 = arith.constant 0 : i32
    %c0_i32_0 = arith.constant 0 : i32
    %c0_i32_1 = arith.constant 0 : i32
    return %arg0, %c0_i32, %c0_i32_0 : i32, i32, i32
  }
  func.func @transform_4(%arg0: i32) -> (i32, i32) {
    %c0_i32 = arith.constant 0 : i32
    %c0_i32_0 = arith.constant 0 : i32
    %c0_i32_1 = arith.constant 0 : i32
    return %c0_i32, %c0_i32_0 : i32, i32
  }
  func.func @transform_5(%arg0: i32) -> (i32, i32) {
    %c0_i32 = arith.constant 0 : i32
    %c0_i32_0 = arith.constant 0 : i32
    %c0_i32_1 = arith.constant 0 : i32
    return %c0_i32, %c0_i32_0 : i32, i32
  }
  func.func @transform_6(%arg0: i32) -> (i32, i32) {
    %c0_i32 = arith.constant 0 : i32
    %c0_i32_0 = arith.constant 0 : i32
    %c0_i32_1 = arith.constant 0 : i32
    return %c0_i32, %c0_i32_0 : i32, i32
  }
  func.func @transform_7(%arg0: i32) -> (i32, i32, i32) {
    %c0_i32 = arith.constant 0 : i32
    %c0_i32_0 = arith.constant 0 : i32
    %c0_i32_1 = arith.constant 0 : i32
    return %arg0, %c0_i32, %c0_i32_0 : i32, i32, i32
  }
}

</mosaic_0001>

<llo_original>
// kernel: tpu_custom_call.1
$region0: #{tpu_custom_call.1}
  #allocation0 [shape = 'u32[]', space=smem, size = 0x4, offset = 0x4, fixed_abs, tag = 'smem constant byte address 0x4 - core index']
  #allocation1 [shape = 'u32[144,128]{1,0:T(1,128)}', space=vmem, size = 0x12000, scoped, tag = 'internal scratch']
  %s0 = inlined_call_operand.vmem [shape: bf16[2,8,64], index: 0, kind: input, shape index: {}]
  %s1 = inlined_call_operand.hbm [shape: bf16[64,512], index: 1, kind: input, shape index: {}]
  %s2 = inlined_call_operand.vmem [shape: s32[2,8,8], index: 2, kind: input, shape index: {}]
  %s3 = inlined_call_operand.vmem [shape: f32[2,8,6], index: 3, kind: input, shape index: {}]
  %s4 = inlined_call_operand.vmem [shape: f32[4,129], index: 4, kind: input, shape index: {}]
  %s5 = inlined_call_operand.hbm [shape: f32[4,129], index: 5, kind: input, shape index: {}]
  %s6 = inlined_call_operand.vmem [shape: f32[2,128], index: 6, kind: input, shape index: {}]
  %s7 = inlined_call_operand.hbm [shape: f32[2,8,128], index: 7, kind: output, shape index: {}]
  %s8 = sld [smem:[#allocation0]]
  $region69: #{tpu_custom_call.1} parent=0
    _
  %s10 = ssub.s32 1, %s8
  %s11 = scalar_select 0, %s10, %s8
  $region1: #{tpu_custom_call.1} parent=0
    #allocation2 [shape = 'u8[65536]{0}', space=vmem, size = 0x10000, scoped, tag = 'input window, operand 1, single buffered']
    #allocation3 [shape = 's32[2]{0}', space=sflag, size = 0x8, scoped, tag = 'scoped memory for tpu_custom_call.1']
    #allocation4 [shape = 's32[2]{0}', space=sflag, size = 0x8, scoped, tag = 'scoped memory for tpu_custom_call.1']
    #allocation5 [shape = 'u8[4096]{0}', space=vmem, size = 0x1000, scoped, tag = 'input window, operand 5, single buffered']
    #allocation6 [shape = 's32[1]{0}', space=sflag, size = 0x4, scoped, tag = 'scoped memory for tpu_custom_call.1']
    #allocation7 [shape = 'u8[8192]{0}', space=vmem, size = 0x2000, scoped, tag = 'output window, operand 0']
    %12 = vsyncpa [#allocation3], 0
    %13 = vsyncpa [#allocation6], 0
    %14 = vsyncpa [#allocation4], 0
    %s15 = scalar_lea.sflag [#allocation4], 1
    %16 = vsyncpa %s15, 0
    loop: start=0, step=1, limit=4
    $region2: #{tpu_custom_call.1} parent=1 // loop_pre_header
      _
    $region3: #{tpu_custom_call.1} parent=1 // loop_header
      %s18 = sphi 0, %s22
      %p19 = scmp.ge.s32.totalorder %s18, 4
      %s28 = sphi 0, %s30
      %s31 = sphi 0, %s28
      %s32 = sphi 0, %s31
      %s48 = sphi 0, %s32
      %s52 = sphi 0, %s52
      %s54 = sphi 0, %s52
      %s55 = sphi 0, %s54
      %s69 = sphi 0, %s55
      %s75 = sphi 0, %s77
      %s78 = sphi 0, %s75
      %s79 = sphi 0, %s78
      %s95 = sphi 0, %s79
      %s101 = sphi 0, %s103
      %s104 = sphi 0, %s101
      %s105 = sphi 0, %s104
      %s121 = sphi 0, %s105
      %s125 = sphi 0, %s125
      %s127 = sphi 0, %s125
      %s128 = sphi 0, %s127
      %s142 = sphi 0, %s128
      %s146 = sphi 0, %s146
      %s148 = sphi 0, %s146
      %s149 = sphi 0, %s148
      %s163 = sphi 0, %s149
      %s167 = sphi 0, %s167
      %s169 = sphi 0, %s167
      %s170 = sphi 0, %s169
      %s184 = sphi 0, %s170
      %s190 = sphi 0, %s192
      %s193 = sphi 0, %s190
      %s194 = sphi 0, %s193
      %s210 = sphi 0, %s194
    $region4: #{tpu_custom_call.1} parent=1 // loop_header_branch
      %21 = sbr.rel (%p19) target = $region8
    $region5: #{tpu_custom_call.1} parent=1 // loop_body
      %s23 = ssub.s32 %s18, 1
      %s24 = ssub.s32 %s18, 2
      %s25 = sadd.s32 %s18, 1
      %s26 = ssub.s32 %s18, %s25
      %p27 = scmp.eq.s32.totalorder %s26, 0
      %s29 = sadd.s32 %s28, 1
      %s30 = scalar_select %p27, %s28, %s29
      %p33 = pneg %p27
      %p34 = scmp.eq.s32.totalorder %s18, 1
      %p35 = por %p33, %p34
      %p36 = scmp.ne.s32.totalorder %s28, %s31
      %p37 = scmp.eq.s32.totalorder %s18, 0
      %p38 = por %p36, %p37
      %p39 = scmp.ne.s32.totalorder %s28, %s31
      %p40 = scmp.eq.s32.totalorder %s23, 1
      %p41 = por %p39, %p40
      %p42 = scmp.ne.s32.totalorder %s31, %s32
      %p43 = scmp.eq.s32.totalorder %s23, 0
      %p44 = por %p42, %p43
      %p45 = scmp.ne.s32.totalorder %s31, %s32
      %p46 = scmp.eq.s32.totalorder %s24, 1
      %p47 = por %p45, %p46
      %p49 = scmp.ne.s32.totalorder %s32, %s48
      %p50 = scmp.eq.s32.totalorder %s24, 0
      %p51 = por %p49, %p50
      %s53 = sadd.s32 %s52, 1
      %p56 = scmp.eq.s32.totalorder %s18, 1
      %p57 = scmp.ne.s32.totalorder %s52, %s54
      %p58 = scmp.eq.s32.totalorder %s18, 0
      %p59 = por %p57, %p58
      %p60 = scmp.ne.s32.totalorder %s52, %s54
      %p61 = scmp.eq.s32.totalorder %s23, 1
      %p62 = por %p60, %p61
      %p63 = scmp.ne.s32.totalorder %s54, %s55
      %p64 = scmp.eq.s32.totalorder %s23, 0
      %p65 = por %p63, %p64
      %p66 = scmp.ne.s32.totalorder %s54, %s55
      %p67 = scmp.eq.s32.totalorder %s24, 1
      %p68 = por %p66, %p67
      %p70 = scmp.ne.s32.totalorder %s55, %s69
      %p71 = scmp.eq.s32.totalorder %s24, 0
      %p72 = por %p70, %p71
      %s73 = ssub.s32 %s18, %s25
      %p74 = scmp.eq.s32.totalorder %s73, 0
      %s76 = sadd.s32 %s75, 1
      %s77 = scalar_select %p74, %s75, %s76
      %p80 = pneg %p74
      %p81 = scmp.eq.s32.totalorder %s18, 1
      %p82 = por %p80, %p81
      %p83 = scmp.ne.s32.totalorder %s75, %s78
      %p84 = scmp.eq.s32.totalorder %s18, 0
      %p85 = por %p83, %p84
      %p86 = scmp.ne.s32.totalorder %s75, %s78
      %p87 = scmp.eq.s32.totalorder %s23, 1
      %p88 = por %p86, %p87
      %p89 = scmp.ne.s32.totalorder %s78, %s79
      %p90 = scmp.eq.s32.totalorder %s23, 0
      %p91 = por %p89, %p90
      %p92 = scmp.ne.s32.totalorder %s78, %s79
      %p93 = scmp.eq.s32.totalorder %s24, 1
      %p94 = por %p92, %p93
      %p96 = scmp.ne.s32.totalorder %s79, %s95
      %p97 = scmp.eq.s32.totalorder %s24, 0
      %p98 = por %p96, %p97
      %s99 = ssub.s32 %s18, %s25
      %p100 = scmp.eq.s32.totalorder %s99, 0
      %s102 = sadd.s32 %s101, 1
      %s103 = scalar_select %p100, %s101, %s102
      %p106 = pneg %p100
      %p107 = scmp.eq.s32.totalorder %s18, 1
      %p108 = por %p106, %p107
      %p109 = scmp.ne.s32.totalorder %s101, %s104
      %p110 = scmp.eq.s32.totalorder %s18, 0
      %p111 = por %p109, %p110
      %p112 = scmp.ne.s32.totalorder %s101, %s104
      %p113 = scmp.eq.s32.totalorder %s23, 1
      %p114 = por %p112, %p113
      %p115 = scmp.ne.s32.totalorder %s104, %s105
      %p116 = scmp.eq.s32.totalorder %s23, 0
      %p117 = por %p115, %p116
      %p118 = scmp.ne.s32.totalorder %s104, %s105
      %p119 = scmp.eq.s32.totalorder %s24, 1
      %p120 = por %p118, %p119
      %p122 = scmp.ne.s32.totalorder %s105, %s121
      %p123 = scmp.eq.s32.totalorder %s24, 0
      %p124 = por %p122, %p123
      %s126 = sadd.s32 %s125, 1
      %p129 = scmp.eq.s32.totalorder %s18, 1
      %p130 = scmp.ne.s32.totalorder %s125, %s127
      %p131 = scmp.eq.s32.totalorder %s18, 0
      %p132 = por %p130, %p131
      %p133 = scmp.ne.s32.totalorder %s125, %s127
      %p134 = scmp.eq.s32.totalorder %s23, 1
      %p135 = por %p133, %p134
      %p136 = scmp.ne.s32.totalorder %s127, %s128
      %p137 = scmp.eq.s32.totalorder %s23, 0
      %p138 = por %p136, %p137
      %p139 = scmp.ne.s32.totalorder %s127, %s128
      %p140 = scmp.eq.s32.totalorder %s24, 1
      %p141 = por %p139, %p140
      %p143 = scmp.ne.s32.totalorder %s128, %s142
      %p144 = scmp.eq.s32.totalorder %s24, 0
      %p145 = por %p143, %p144
      %s147 = sadd.s32 %s146, 1
      %p150 = scmp.eq.s32.totalorder %s18, 1
      %p151 = scmp.ne.s32.totalorder %s146, %s148
      %p152 = scmp.eq.s32.totalorder %s18, 0
      %p153 = por %p151, %p152
      %p154 = scmp.ne.s32.totalorder %s146, %s148
      %p155 = scmp.eq.s32.totalorder %s23, 1
      %p156 = por %p154, %p155
      %p157 = scmp.ne.s32.totalorder %s148, %s149
      %p158 = scmp.eq.s32.totalorder %s23, 0
      %p159 = por %p157, %p158
      %p160 = scmp.ne.s32.totalorder %s148, %s149
      %p161 = scmp.eq.s32.totalorder %s24, 1
      %p162 = por %p160, %p161
      %p164 = scmp.ne.s32.totalorder %s149, %s163
      %p165 = scmp.eq.s32.totalorder %s24, 0
      %p166 = por %p164, %p165
      %s168 = sadd.s32 %s167, 1
      %p171 = scmp.eq.s32.totalorder %s18, 1
      %p172 = scmp.ne.s32.totalorder %s167, %s169
      %p173 = scmp.eq.s32.totalorder %s18, 0
      %p174 = por %p172, %p173
      %p175 = scmp.ne.s32.totalorder %s167, %s169
      %p176 = scmp.eq.s32.totalorder %s23, 1
      %p177 = por %p175, %p176
      %p178 = scmp.ne.s32.totalorder %s169, %s170
      %p179 = scmp.eq.s32.totalorder %s23, 0
      %p180 = por %p178, %p179
      %p181 = scmp.ne.s32.totalorder %s169, %s170
      %p182 = scmp.eq.s32.totalorder %s24, 1
      %p183 = por %p181, %p182
      %p185 = scmp.ne.s32.totalorder %s170, %s184
      %p186 = scmp.eq.s32.totalorder %s24, 0
      %p187 = por %p185, %p186
      %s188 = ssub.s32 %s18, %s25
      %p189 = scmp.eq.s32.totalorder %s188, 0
      %s191 = sadd.s32 %s190, 1
      %s192 = scalar_select %p189, %s190, %s191
      %p195 = pneg %p189
      %p196 = scmp.eq.s32.totalorder %s18, 1
      %p197 = por %p195, %p196
      %p198 = scmp.ne.s32.totalorder %s190, %s193
      %p199 = scmp.eq.s32.totalorder %s18, 0
      %p200 = por %p198, %p199
      %p201 = scmp.ne.s32.totalorder %s190, %s193
      %p202 = scmp.eq.s32.totalorder %s23, 1
      %p203 = por %p201, %p202
      %p204 = scmp.ne.s32.totalorder %s193, %s194
      %p205 = scmp.eq.s32.totalorder %s23, 0
      %p206 = por %p204, %p205
      %p207 = scmp.ne.s32.totalorder %s193, %s194
      %p208 = scmp.eq.s32.totalorder %s24, 1
      %p209 = por %p207, %p208
      %p211 = scmp.ne.s32.totalorder %s194, %s210
      %p212 = scmp.eq.s32.totalorder %s24, 0
      %p213 = por %p211, %p212
      %p214 = scmp.le.s32.totalorder 1, %s18
      %p215 = scmp.lt.s32.totalorder %s18, 3
      %p216 = pnand %p214, %p215
      %p217 = pneg %p216
      // Predicated region
      $region9: #{tpu_custom_call.1} parent=5 // pred_check
        _
      $region10: #{tpu_custom_call.1} parent=5 // pred_check_branch
        %219 = sbr.rel (%p216) target = $region12
      $region11: #{tpu_custom_call.1} parent=5 // pred_region
        %s220 = ssub.s32 %s18, 1
        // Predicated region
        $region13: #{tpu_custom_call.1} parent=11 // pred_check
          %p221 = pneg %p65
        $region14: #{tpu_custom_call.1} parent=11 // pred_check_branch
          %223 = sbr.rel (%p221) target = $region16
        $region15: #{tpu_custom_call.1} parent=11 // pred_region
          %s225 = ssub.s32 2048, 2048
          %226 = vsyncadd [#allocation3], %s225
          %s227 = sshll.u32 [#allocation2], 4
          %s228 = int_to_ptr.vmem [resolvable:$true] %s227
          %233 = dma.hbm_to_vmem [thread:$0]  %s1, 2048, %s228, [#allocation3], 256, 256, 16
        $region16: #{tpu_custom_call.1} parent=11 // pred_fallthru
          _
        // Predicated region
        $region17: #{tpu_custom_call.1} parent=11 // pred_check
          %p234 = pneg %p138
        $region18: #{tpu_custom_call.1} parent=11 // pred_check_branch
          %236 = sbr.rel (%p234) target = $region20
        $region19: #{tpu_custom_call.1} parent=11 // pred_region
          _
        $region20: #{tpu_custom_call.1} parent=11 // pred_fallthru
          _
        // Predicated region
        $region21: #{tpu_custom_call.1} parent=11 // pred_check
          %p237 = pneg %p159
        $region22: #{tpu_custom_call.1} parent=11 // pred_check_branch
          %239 = sbr.rel (%p237) target = $region24
        $region23: #{tpu_custom_call.1} parent=11 // pred_region
          %s241 = ssub.s32 128, 128
          %242 = vsyncadd [#allocation6], %s241
          %s244 = sshll.u32 [#allocation5], 4
          %s245 = int_to_ptr.vmem [resolvable:$true] %s244
          %247 = dma.hbm_to_vmem [thread:$0]  %s5, 128, %s245, [#allocation6]
        $region24: #{tpu_custom_call.1} parent=11 // pred_fallthru
          _
        // Predicated region
        $region25: #{tpu_custom_call.1} parent=11 // pred_check
          %p248 = pneg %p180
        $region26: #{tpu_custom_call.1} parent=11 // pred_check_branch
          %250 = sbr.rel (%p248) target = $region28
        $region27: #{tpu_custom_call.1} parent=11 // pred_region
          _
        $region28: #{tpu_custom_call.1} parent=11 // pred_fallthru
          _
      $region12: #{tpu_custom_call.1} parent=5 // pred_fallthru
        _
      %p251 = scmp.lt.s32.totalorder %s18, 2
      // Predicated region
      $region29: #{tpu_custom_call.1} parent=5 // pred_check
        %p252 = pneg %p251
      $region30: #{tpu_custom_call.1} parent=5 // pred_check_branch
        %254 = sbr.rel (%p252) target = $region32
      $region31: #{tpu_custom_call.1} parent=5 // pred_region
        // Predicated region
        $region33: #{tpu_custom_call.1} parent=31 // pred_check
          %p255 = pneg %p38
        $region34: #{tpu_custom_call.1} parent=31 // pred_check_branch
          %257 = sbr.rel (%p255) target = $region36
        $region35: #{tpu_custom_call.1} parent=31 // pred_region
          %p258 = scmp.lt.s32.totalorder %s18, 1
          %s259 = scalar_select %p258, %s18, 1
          %s260 = smul.addr %s259, 4
          %s261 = scalar_lea.vmem %s0, %s260
        $region36: #{tpu_custom_call.1} parent=31 // pred_fallthru
          _
        // Predicated region
        $region37: #{tpu_custom_call.1} parent=31 // pred_check
          %p262 = pneg %p85
        $region38: #{tpu_custom_call.1} parent=31 // pred_check_branch
          %264 = sbr.rel (%p262) target = $region40
        $region39: #{tpu_custom_call.1} parent=31 // pred_region
          %p265 = scmp.lt.s32.totalorder %s18, 1
          %s266 = scalar_select %p265, %s18, 1
          %s267 = smul.addr %s266, 8
          %s268 = scalar_lea.vmem %s2, %s267
        $region40: #{tpu_custom_call.1} parent=31 // pred_fallthru
          _
        // Predicated region
        $region41: #{tpu_custom_call.1} parent=31 // pred_check
          %p269 = pneg %p111
        $region42: #{tpu_custom_call.1} parent=31 // pred_check_branch
          %271 = sbr.rel (%p269) target = $region44
        $region43: #{tpu_custom_call.1} parent=31 // pred_region
          %p272 = scmp.lt.s32.totalorder %s18, 1
          %s273 = scalar_select %p272, %s18, 1
          %s274 = smul.addr %s273, 8
          %s275 = scalar_lea.vmem %s3, %s274
        $region44: #{tpu_custom_call.1} parent=31 // pred_fallthru
          _
      $region32: #{tpu_custom_call.1} parent=5 // pred_fallthru
        _
      %p276 = scmp.le.s32.totalorder 1, %s18
      %p277 = scmp.lt.s32.totalorder %s18, 3
      %p278 = pnand %p276, %p277
      %p279 = pneg %p278
      // Predicated region
      $region45: #{tpu_custom_call.1} parent=5 // pred_check
        _
      $region46: #{tpu_custom_call.1} parent=5 // pred_check_branch
        %281 = sbr.rel (%p278) target = $region48
      $region47: #{tpu_custom_call.1} parent=5 // pred_region
        %s282 = ssub.s32 %s18, 1
        // Predicated region
        $region49: #{tpu_custom_call.1} parent=47 // pred_check
          %p283 = pneg %p65
        $region50: #{tpu_custom_call.1} parent=47 // pred_check_branch
          %285 = sbr.rel (%p283) target = $region52
        $region51: #{tpu_custom_call.1} parent=47 // pred_region
          %286 = dma.done [#allocation3], 2048
        $region52: #{tpu_custom_call.1} parent=47 // pred_fallthru
          _
        // Predicated region
        $region53: #{tpu_custom_call.1} parent=47 // pred_check
          %p287 = pneg %p159
        $region54: #{tpu_custom_call.1} parent=47 // pred_check_branch
          %289 = sbr.rel (%p287) target = $region56
        $region55: #{tpu_custom_call.1} parent=47 // pred_region
          %290 = dma.done [#allocation6], 128
        $region56: #{tpu_custom_call.1} parent=47 // pred_fallthru
          _
        %p291 = scmp.lt.s32.totalorder %s23, 1
        %s292 = scalar_select %p291, %s23, 1
        %s293 = smul.addr %s292, 4
        %s294 = scalar_lea.vmem %s0, %s293
        %p295 = pneg %p44
        %p296 = pneg %p41
        %p297 = pneg %p65
        %p298 = pneg %p62
        %p299 = scmp.lt.s32.totalorder %s23, 1
        %s300 = scalar_select %p299, %s23, 1
        %s301 = smul.addr %s300, 8
        %s302 = scalar_lea.vmem %s2, %s301
        %p303 = pneg %p91
        %p304 = pneg %p88
        %p305 = scmp.lt.s32.totalorder %s23, 1
        %s306 = scalar_select %p305, %s23, 1
        %s307 = smul.addr %s306, 8
        %s308 = scalar_lea.vmem %s3, %s307
        %p309 = pneg %p117
        %p310 = pneg %p114
        %p311 = pneg %p138
        %p312 = pneg %p135
        %p313 = pneg %p159
        %p314 = pneg %p156
        %p315 = pneg %p180
        %p316 = pneg %p177
        %p317 = pneg %p206
        %p318 = pneg %p203
        %s319 = sand.u32 %s193, 1
        %s320 = scalar_lea.sflag [#allocation4], %s319
        %s321 = sand.u32 %s193, 1
        %s322 = smul.addr %s321, 8
        %s323 = scalar_lea.vmem [#allocation7], %s322
        %p324 = scmp.lt.s32.totalorder %s23, 1
        %s325 = scalar_select %p324, %s23, 1
        %s326 = smul.addr %s325, 4
        %s327 = scalar_lea.vmem %s0, %s326
        %p328 = scmp.lt.s32.totalorder %s23, 1
        %s329 = scalar_select %p328, %s23, 1
        %s330 = smul.addr %s329, 8
        %s331 = scalar_lea.vmem %s2, %s330
        %p332 = scmp.lt.s32.totalorder %s23, 1
        %s333 = scalar_select %p332, %s23, 1
        %s334 = smul.addr %s333, 8
        %s335 = scalar_lea.vmem %s3, %s334
        %v337 = vld [vmem:[#allocation2] sm:$0xff]
        %v338 = vld [vmem:[#allocation2 + $0x8] sm:$0xff]
        %v339 = vld [vmem:[#allocation2 + $0x10] sm:$0xff]
        %v340 = vld [vmem:[#allocation2 + $0x18] sm:$0xff]
        %v341 = vld [vmem:[#allocation2 + $0x20] sm:$0xff]
        %v342 = vld [vmem:[#allocation2 + $0x28] sm:$0xff]
        %v343 = vld [vmem:[#allocation2 + $0x30] sm:$0xff]
        %v344 = vld [vmem:[#allocation2 + $0x38] sm:$0xff]
        %v345 = vld [vmem:[#allocation2 + $0x40] sm:$0xff]
        %v346 = vld [vmem:[#allocation2 + $0x48] sm:$0xff]
        %v347 = vld [vmem:[#allocation2 + $0x50] sm:$0xff]
        %v348 = vld [vmem:[#allocation2 + $0x58] sm:$0xff]
        %v349 = vld [vmem:[#allocation2 + $0x60] sm:$0xff]
        %v350 = vld [vmem:[#allocation2 + $0x68] sm:$0xff]
        %v351 = vld [vmem:[#allocation2 + $0x70] sm:$0xff]
        %v352 = vld [vmem:[#allocation2 + $0x78] sm:$0xff]
        %v353 = vld [vmem:[%s4] sm:$0xff]
        %v354 = vld [vmem:[#allocation5] sm:$0xff]
        %v355 = vld [vmem:[%s6] sm:$0x1]
        %v356 = vld [vmem:[%s6 + $0x1] sm:$0x1]
        %v357 = vlaneseq
        %v358 = vand.u32 %v357, 127
        %v359 = vld [vmem:[%s327] sm:$0xf]
        %v376 = vunpack.c.l.b16 %v337
        %v377 = vunpack.c.h.b16 %v337
        %v378 = vunpack.c.l.b16 %v338
        %v379 = vunpack.c.h.b16 %v338
        %v380 = vunpack.c.l.b16 %v339
        %v381 = vunpack.c.h.b16 %v339
        %v382 = vunpack.c.l.b16 %v340
        %v383 = vunpack.c.h.b16 %v340
        %v384 = vunpack.c.l.b16 %v341
        %v385 = vunpack.c.h.b16 %v341
        %v386 = vunpack.c.l.b16 %v342
        %v387 = vunpack.c.h.b16 %v342
        %v388 = vunpack.c.l.b16 %v343
        %v389 = vunpack.c.h.b16 %v343
        %v390 = vunpack.c.l.b16 %v344
        %v391 = vunpack.c.h.b16 %v344
        %v392 = vunpack.c.l.b16 %v345
        %v393 = vunpack.c.h.b16 %v345
        %v394 = vunpack.c.l.b16 %v346
        %v395 = vunpack.c.h.b16 %v346
        %v396 = vunpack.c.l.b16 %v347
        %v397 = vunpack.c.h.b16 %v347
        %v398 = vunpack.c.l.b16 %v348
        %v399 = vunpack.c.h.b16 %v348
        %v400 = vunpack.c.l.b16 %v349
        %v401 = vunpack.c.h.b16 %v349
        %v402 = vunpack.c.l.b16 %v350
        %v403 = vunpack.c.h.b16 %v350
        %v404 = vunpack.c.l.b16 %v351
        %v405 = vunpack.c.h.b16 %v351
        %v406 = vunpack.c.l.b16 %v352
        %v407 = vunpack.c.h.b16 %v352
        %v408 = vpack.c.b16 %v380, %v376
        %v409 = vpack.c.b16 %v381, %v377
        %v410 = vpack.c.b16 %v382, %v378
        %v411 = vpack.c.b16 %v383, %v379
        %v412 = vpack.c.b16 %v388, %v384
        %v413 = vpack.c.b16 %v389, %v385
        %v414 = vpack.c.b16 %v390, %v386
        %v415 = vpack.c.b16 %v391, %v387
        %v416 = vpack.c.b16 %v396, %v392
        %v417 = vpack.c.b16 %v397, %v393
        %v418 = vpack.c.b16 %v398, %v394
        %v419 = vpack.c.b16 %v399, %v395
        %v420 = vpack.c.b16 %v404, %v400
        %v421 = vpack.c.b16 %v405, %v401
        %v422 = vpack.c.b16 %v406, %v402
        %v423 = vpack.c.b16 %v407, %v403
        %vm440 = vcmask 523264
        %v442 = vsel %vm440, %v359, 0
        %444 = vmatprep.subr.bf16.mxu0 0
        %445 = vmatpush1.bf16.msra.mxu0 0
        %446 = vmatprep.subr.bf16.mxu0 0
        %447 = vmatpush1.bf16.msra.mxu0 0
        %448 = vmatprep.subr.bf16.mxu0 0
        %449 = vmatpush1.bf16.msra.mxu0 0
        %450 = vmatprep.subr.bf16.mxu0 0
        %451 = vmatpush1.bf16.msra.mxu0 0
        %452 = vmatprep.subr.bf16.mxu0 %v421
        %453 = vmatpush1.bf16.msra.mxu0 %v420
        %454 = vmatprep.subr.bf16.mxu0 %v417
        %455 = vmatpush1.bf16.msra.mxu0 %v416
        %456 = vmatprep.subr.bf16.mxu0 %v413
        %457 = vmatpush1.bf16.msra.mxu0 %v412
        %458 = vmatprep.subr.bf16.mxu0 %v409
        %459 = vmatpush1.bf16.msra.mxu0 %v408
        %460 = vmatprep.subr.bf16.mxu0 0
        %461 = vmatpush2.bf16.msra.mxu0 0
        %462 = vmatprep.subr.bf16.mxu0 0
        %463 = vmatpush2.bf16.msra.mxu0 0
        %464 = vmatprep.subr.bf16.mxu0 0
        %465 = vmatpush2.bf16.msra.mxu0 0
        %466 = vmatprep.subr.bf16.mxu0 0
        %467 = vmatpush2.bf16.msra.mxu0 0
        %468 = vmatprep.subr.bf16.mxu0 0
        %469 = vmatpush2.bf16.msra.mxu0 0
        %470 = vmatprep.subr.bf16.mxu0 0
        %471 = vmatpush2.bf16.msra.mxu0 0
        %472 = vmatprep.subr.bf16.mxu0 0
        %473 = vmatpush2.bf16.msra.mxu0 0
        %474 = vmatprep.subr.bf16.mxu0 0
        %475 = vmatpush2.bf16.msra.mxu0 0
        %476 = vmatprep.mubr.bf16.mxu0 0
        %477 = vmatmul.mubr.bf16.gmra.mxu0 %v442
        %v478 = vpop.f32.mrf.mxu0
        %v479 = vadd.f32 0.0, %v478
        %v480 = vpop.f32.mrf.mxu0
        %v481 = vadd.f32 0.0, %v480
        %v482 = vpop.f32.mrf.mxu0
        %v483 = vpop.f32.mrf.mxu0
        %484 = vdwg.mxu0
        %485 = vmatprep.subr.bf16.mxu0 0
        %486 = vmatpush1.bf16.msra.mxu0 0
        %487 = vmatprep.subr.bf16.mxu0 0
        %488 = vmatpush1.bf16.msra.mxu0 0
        %489 = vmatprep.subr.bf16.mxu0 0
        %490 = vmatpush1.bf16.msra.mxu0 0
        %491 = vmatprep.subr.bf16.mxu0 0
        %492 = vmatpush1.bf16.msra.mxu0 0
        %493 = vmatprep.subr.bf16.mxu0 %v423
        %494 = vmatpush1.bf16.msra.mxu0 %v422
        %495 = vmatprep.subr.bf16.mxu0 %v419
        %496 = vmatpush1.bf16.msra.mxu0 %v418
        %497 = vmatprep.subr.bf16.mxu0 %v415
        %498 = vmatpush1.bf16.msra.mxu0 %v414
        %499 = vmatprep.subr.bf16.mxu0 %v411
        %500 = vmatpush1.bf16.msra.mxu0 %v410
        %501 = vmatprep.subr.bf16.mxu0 0
        %502 = vmatpush2.bf16.msra.mxu0 0
        %503 = vmatprep.subr.bf16.mxu0 0
        %504 = vmatpush2.bf16.msra.mxu0 0
        %505 = vmatprep.subr.bf16.mxu0 0
        %506 = vmatpush2.bf16.msra.mxu0 0
        %507 = vmatprep.subr.bf16.mxu0 0
        %508 = vmatpush2.bf16.msra.mxu0 0
        %509 = vmatprep.subr.bf16.mxu0 0
        %510 = vmatpush2.bf16.msra.mxu0 0
        %511 = vmatprep.subr.bf16.mxu0 0
        %512 = vmatpush2.bf16.msra.mxu0 0
        %513 = vmatprep.subr.bf16.mxu0 0
        %514 = vmatpush2.bf16.msra.mxu0 0
        %515 = vmatprep.subr.bf16.mxu0 0
        %516 = vmatpush2.bf16.msra.mxu0 0
        %517 = vmatprep.mubr.bf16.mxu0 0
        %518 = vmatmul.mubr.bf16.gmra.mxu0 %v442
        %v519 = vpop.f32.mrf.mxu0
        %v520 = vadd.f32 0.0, %v519
        %v521 = vpop.f32.mrf.mxu0
        %v522 = vadd.f32 0.0, %v521
        %v523 = vpop.f32.mrf.mxu0
        %v524 = vpop.f32.mrf.mxu0
        %525 = vdwg.mxu0
        %v526 = vld [vmem:[%s331] sm:$0xff]
        %v527 = vld [vmem:[%s335] sm:$0xff]
        %528 = vset.pattern.permute.xlu0 0
        %529 = vperm.xlu0 %528, %v526
        %v530 = vpop.permute.xlu0 %529
        %vm531 = vcmp.eq.s32.totalorder %v530, %v358
        %v532 = vsel %vm531, 1.0, 0.0
        %533 = vset.pattern.permute.xlu0 2
        %534 = vperm.xlu0 %533, %v526
        %v535 = vpop.permute.xlu0 %534
        %vm536 = vcmp.eq.s32.totalorder %v535, %v358
        %v537 = vsel %vm536, 1.0, 0.0
        %v539 = vcombine.high %v353, %v353
        %vm540 = vcmask 31744
        %v542 = vsel %vm540, %v537, 0
        %vm544 = vcmask 1043456
        %v545 = vsel %vm544, %v539, 0
        %547 = vmatprep.subr.mxu0 0.0
        %548 = vmatpush1.msra.mxu0 0.0
        %549 = vmatprep.subr.mxu0 0.0
        %550 = vmatpush1.msra.mxu0 0.0
        %551 = vmatprep.subr.mxu0 0.0
        %552 = vmatpush1.msra.mxu0 0.0
        %553 = vmatprep.subr.mxu0 0.0
        %554 = vmatpush1.msra.mxu0 0.0
        %555 = vmatprep.subr.mxu0 0.0
        %556 = vmatpush1.msra.mxu0 0.0
        %557 = vmatprep.subr.mxu0 0.0
        %558 = vmatpush1.msra.mxu0 0.0
        %559 = vmatprep.subr.mxu0 0.0
        %560 = vmatpush1.msra.mxu0 0.0
        %561 = vmatprep.subr.mxu0 0.0
        %562 = vmatpush1.msra.mxu0 0.0
        %563 = vmatprep.subr.mxu0 0.0
        %564 = vmatpush1.msra.mxu0 0.0
        %565 = vmatprep.subr.mxu0 0.0
        %566 = vmatpush1.msra.mxu0 0.0
        %567 = vmatprep.subr.mxu0 0.0
        %568 = vmatpush1.msra.mxu0 0.0
        %569 = vmatprep.subr.mxu0 0.0
        %570 = vmatpush1.msra.mxu0 0.0
        %571 = vmatprep.subr.mxu0 0.0
        %572 = vmatpush1.msra.mxu0 0.0
        %573 = vmatprep.subr.mxu0 0.0
        %574 = vmatpush1.msra.mxu0 0.0
        %575 = vmatprep.subr.mxu0 0.0
        %576 = vmatpush1.msra.mxu0 0.0
        %577 = vmatprep.subr.mxu0 0.0
        %578 = vmatpush1.msra.mxu0 %v545
        %579 = vmatprep.subr.mxu0 0.0
        %580 = vmatpush2.msra.mxu0 0.0
        %581 = vmatprep.subr.mxu0 0.0
        %582 = vmatpush2.msra.mxu0 0.0
        %583 = vmatprep.subr.mxu0 0.0
        %584 = vmatpush2.msra.mxu0 0.0
        %585 = vmatprep.subr.mxu0 0.0
        %586 = vmatpush2.msra.mxu0 0.0
        %587 = vmatprep.subr.mxu0 0.0
        %588 = vmatpush2.msra.mxu0 0.0
        %589 = vmatprep.subr.mxu0 0.0
        %590 = vmatpush2.msra.mxu0 0.0
        %591 = vmatprep.subr.mxu0 0.0
        %592 = vmatpush2.msra.mxu0 0.0
        %593 = vmatprep.subr.mxu0 0.0
        %594 = vmatpush2.msra.mxu0 0.0
        %595 = vmatprep.subr.mxu0 0.0
        %596 = vmatpush2.msra.mxu0 0.0
        %597 = vmatprep.subr.mxu0 0.0
        %598 = vmatpush2.msra.mxu0 0.0
        %599 = vmatprep.subr.mxu0 0.0
        %600 = vmatpush2.msra.mxu0 0.0
        %601 = vmatprep.subr.mxu0 0.0
        %602 = vmatpush2.msra.mxu0 0.0
        %603 = vmatprep.subr.mxu0 0.0
        %604 = vmatpush2.msra.mxu0 0.0
        %605 = vmatprep.subr.mxu0 0.0
        %606 = vmatpush2.msra.mxu0 0.0
        %607 = vmatprep.subr.mxu0 0.0
        %608 = vmatpush2.msra.mxu0 0.0
        %609 = vmatprep.subr.mxu0 0.0
        %610 = vmatpush2.msra.mxu0 0.0
        %611 = vmatprep.mubr.f32.mxu0 0.0
        %612 = vmatmul.mubr.f32.gmra.mxu0 %v542
        %v613 = vpop.f32.mrf.mxu0
        %v614 = vadd.f32 0.0, %v613
        %v615 = vpop.f32.mrf.mxu0
        %616 = vdwg.mxu0
        %vm617 = vcmask 64512
        %v619 = vsel %vm617, %v532, 0
        %621 = vmatprep.subr.mxu0 0.0
        %622 = vmatpush1.msra.mxu0 0.0
        %623 = vmatprep.subr.mxu0 0.0
        %624 = vmatpush1.msra.mxu0 0.0
        %625 = vmatprep.subr.mxu0 0.0
        %626 = vmatpush1.msra.mxu0 0.0
        %627 = vmatprep.subr.mxu0 0.0
        %628 = vmatpush1.msra.mxu0 0.0
        %629 = vmatprep.subr.mxu0 0.0
        %630 = vmatpush1.msra.mxu0 0.0
        %631 = vmatprep.subr.mxu0 0.0
        %632 = vmatpush1.msra.mxu0 0.0
        %633 = vmatprep.subr.mxu0 0.0
        %634 = vmatpush1.msra.mxu0 0.0
        %635 = vmatprep.subr.mxu0 0.0
        %636 = vmatpush1.msra.mxu0 0.0
        %637 = vmatprep.subr.mxu0 0.0
        %638 = vmatpush1.msra.mxu0 0.0
        %639 = vmatprep.subr.mxu0 0.0
        %640 = vmatpush1.msra.mxu0 0.0
        %641 = vmatprep.subr.mxu0 0.0
        %642 = vmatpush1.msra.mxu0 0.0
        %643 = vmatprep.subr.mxu0 0.0
        %644 = vmatpush1.msra.mxu0 0.0
        %645 = vmatprep.subr.mxu0 0.0
        %646 = vmatpush1.msra.mxu0 0.0
        %647 = vmatprep.subr.mxu0 0.0
        %648 = vmatpush1.msra.mxu0 0.0
        %649 = vmatprep.subr.mxu0 0.0
        %650 = vmatpush1.msra.mxu0 0.0
        %651 = vmatprep.subr.mxu0 0.0
        %652 = vmatpush1.msra.mxu0 %v522
        %653 = vmatprep.subr.mxu0 0.0
        %654 = vmatpush2.msra.mxu0 0.0
        %655 = vmatprep.subr.mxu0 0.0
        %656 = vmatpush2.msra.mxu0 0.0
        %657 = vmatprep.subr.mxu0 0.0
        %658 = vmatpush2.msra.mxu0 0.0
        %659 = vmatprep.subr.mxu0 0.0
        %660 = vmatpush2.msra.mxu0 0.0
        %661 = vmatprep.subr.mxu0 0.0
        %662 = vmatpush2.msra.mxu0 0.0
        %663 = vmatprep.subr.mxu0 0.0
        %664 = vmatpush2.msra.mxu0 0.0
        %665 = vmatprep.subr.mxu0 0.0
        %666 = vmatpush2.msra.mxu0 0.0
        %667 = vmatprep.subr.mxu0 0.0
        %668 = vmatpush2.msra.mxu0 0.0
        %669 = vmatprep.subr.mxu0 0.0
        %670 = vmatpush2.msra.mxu0 0.0
        %671 = vmatprep.subr.mxu0 0.0
        %672 = vmatpush2.msra.mxu0 0.0
        %673 = vmatprep.subr.mxu0 0.0
        %674 = vmatpush2.msra.mxu0 0.0
        %675 = vmatprep.subr.mxu0 0.0
        %676 = vmatpush2.msra.mxu0 0.0
        %677 = vmatprep.subr.mxu0 0.0
        %678 = vmatpush2.msra.mxu0 0.0
        %679 = vmatprep.subr.mxu0 0.0
        %680 = vmatpush2.msra.mxu0 0.0
        %681 = vmatprep.subr.mxu0 0.0
        %682 = vmatpush2.msra.mxu0 0.0
        %683 = vmatprep.subr.mxu0 0.0
        %684 = vmatpush2.msra.mxu0 0.0
        %685 = vmatprep.mubr.f32.mxu0 0.0
        %686 = vmatmul.mubr.f32.gmra.mxu0 %v619
        %v687 = vpop.f32.mrf.mxu0
        %v688 = vadd.f32 %v614, %v687
        %v689 = vpop.f32.mrf.mxu0
        %690 = vdwg.mxu0
        %v691 = vxor.u32 %v688, 2147483648
        %v692 = vmul.f32 %v691, 1.442695
        %v693 = vpow.pop %v692
        %v694 = vadd.f32 %v693, 1.0
        %v695 = vrcp.pop %v694
        %v696 = vmul.f32 1.0, %v695
        %v697 = vmul.f32 %v696, %v527
        %699 = vset.pattern.permute.xlu0 0
        %700 = vperm.xlu0 %699, %v697
        %v701 = vpop.permute.xlu0 %700
        %v703 = vmul.f32 %v701, %v532
        %v704 = vadd.f32 %v703, 0.0
        %v705 = vmul.f32 %v701, %v537
        %v706 = vadd.f32 %v705, 0.0
        %707 = vset.pattern.permute.xlu0 1
        %708 = vperm.xlu0 %707, %v526
        %v709 = vpop.permute.xlu0 %708
        %vm710 = vcmp.eq.s32.totalorder %v709, %v358
        %v711 = vsel %vm710, 1.0, 0.0
        %712 = vset.pattern.permute.xlu0 3
        %713 = vperm.xlu0 %712, %v526
        %v714 = vpop.permute.xlu0 %713
        %vm715 = vcmp.eq.s32.totalorder %v714, %v358
        %v716 = vsel %vm715, 1.0, 0.0
        %v718 = vsel %vm540, %v716, 0
        %720 = vmatprep.subr.mxu0 0.0
        %721 = vmatpush1.msra.mxu0 0.0
        %722 = vmatprep.subr.mxu0 0.0
        %723 = vmatpush1.msra.mxu0 0.0
        %724 = vmatprep.subr.mxu0 0.0
        %725 = vmatpush1.msra.mxu0 0.0
        %726 = vmatprep.subr.mxu0 0.0
        %727 = vmatpush1.msra.mxu0 0.0
        %728 = vmatprep.subr.mxu0 0.0
        %729 = vmatpush1.msra.mxu0 0.0
        %730 = vmatprep.subr.mxu0 0.0
        %731 = vmatpush1.msra.mxu0 0.0
        %732 = vmatprep.subr.mxu0 0.0
        %733 = vmatpush1.msra.mxu0 0.0
        %734 = vmatprep.subr.mxu0 0.0
        %735 = vmatpush1.msra.mxu0 0.0
        %736 = vmatprep.subr.mxu0 0.0
        %737 = vmatpush1.msra.mxu0 0.0
        %738 = vmatprep.subr.mxu0 0.0
        %739 = vmatpush1.msra.mxu0 0.0
        %740 = vmatprep.subr.mxu0 0.0
        %741 = vmatpush1.msra.mxu0 0.0
        %742 = vmatprep.subr.mxu0 0.0
        %743 = vmatpush1.msra.mxu0 0.0
        %744 = vmatprep.subr.mxu0 0.0
        %745 = vmatpush1.msra.mxu0 0.0
        %746 = vmatprep.subr.mxu0 0.0
        %747 = vmatpush1.msra.mxu0 0.0
        %748 = vmatprep.subr.mxu0 0.0
        %749 = vmatpush1.msra.mxu0 0.0
        %750 = vmatprep.subr.mxu0 0.0
        %751 = vmatpush1.msra.mxu0 %v545
        %752 = vmatprep.subr.mxu0 0.0
        %753 = vmatpush2.msra.mxu0 0.0
        %754 = vmatprep.subr.mxu0 0.0
        %755 = vmatpush2.msra.mxu0 0.0
        %756 = vmatprep.subr.mxu0 0.0
        %757 = vmatpush2.msra.mxu0 0.0
        %758 = vmatprep.subr.mxu0 0.0
        %759 = vmatpush2.msra.mxu0 0.0
        %760 = vmatprep.subr.mxu0 0.0
        %761 = vmatpush2.msra.mxu0 0.0
        %762 = vmatprep.subr.mxu0 0.0
        %763 = vmatpush2.msra.mxu0 0.0
        %764 = vmatprep.subr.mxu0 0.0
        %765 = vmatpush2.msra.mxu0 0.0
        %766 = vmatprep.subr.mxu0 0.0
        %767 = vmatpush2.msra.mxu0 0.0
        %768 = vmatprep.subr.mxu0 0.0
        %769 = vmatpush2.msra.mxu0 0.0
        %770 = vmatprep.subr.mxu0 0.0
        %771 = vmatpush2.msra.mxu0 0.0
        %772 = vmatprep.subr.mxu0 0.0
        %773 = vmatpush2.msra.mxu0 0.0
        %774 = vmatprep.subr.mxu0 0.0
        %775 = vmatpush2.msra.mxu0 0.0
        %776 = vmatprep.subr.mxu0 0.0
        %777 = vmatpush2.msra.mxu0 0.0
        %778 = vmatprep.subr.mxu0 0.0
        %779 = vmatpush2.msra.mxu0 0.0
        %780 = vmatprep.subr.mxu0 0.0
        %781 = vmatpush2.msra.mxu0 0.0
        %782 = vmatprep.subr.mxu0 0.0
        %783 = vmatpush2.msra.mxu0 0.0
        %784 = vmatprep.mubr.f32.mxu0 0.0
        %785 = vmatmul.mubr.f32.gmra.mxu0 %v718
        %v786 = vpop.f32.mrf.mxu0
        %v787 = vadd.f32 0.0, %v786
        %v788 = vpop.f32.mrf.mxu0
        %789 = vdwg.mxu0
        %v791 = vsel %vm617, %v711, 0
        %793 = vmatprep.subr.mxu0 0.0
        %794 = vmatpush1.msra.mxu0 0.0
        %795 = vmatprep.subr.mxu0 0.0
        %796 = vmatpush1.msra.mxu0 0.0
        %797 = vmatprep.subr.mxu0 0.0
        %798 = vmatpush1.msra.mxu0 0.0
        %799 = vmatprep.subr.mxu0 0.0
        %800 = vmatpush1.msra.mxu0 0.0
        %801 = vmatprep.subr.mxu0 0.0
        %802 = vmatpush1.msra.mxu0 0.0
        %803 = vmatprep.subr.mxu0 0.0
        %804 = vmatpush1.msra.mxu0 0.0
        %805 = vmatprep.subr.mxu0 0.0
        %806 = vmatpush1.msra.mxu0 0.0
        %807 = vmatprep.subr.mxu0 0.0
        %808 = vmatpush1.msra.mxu0 0.0
        %809 = vmatprep.subr.mxu0 0.0
        %810 = vmatpush1.msra.mxu0 0.0
        %811 = vmatprep.subr.mxu0 0.0
        %812 = vmatpush1.msra.mxu0 0.0
        %813 = vmatprep.subr.mxu0 0.0
        %814 = vmatpush1.msra.mxu0 0.0
        %815 = vmatprep.subr.mxu0 0.0
        %816 = vmatpush1.msra.mxu0 0.0
        %817 = vmatprep.subr.mxu0 0.0
        %818 = vmatpush1.msra.mxu0 0.0
        %819 = vmatprep.subr.mxu0 0.0
        %820 = vmatpush1.msra.mxu0 0.0
        %821 = vmatprep.subr.mxu0 0.0
        %822 = vmatpush1.msra.mxu0 0.0
        %823 = vmatprep.subr.mxu0 0.0
        %824 = vmatpush1.msra.mxu0 %v522
        %825 = vmatprep.subr.mxu0 0.0
        %826 = vmatpush2.msra.mxu0 0.0
        %827 = vmatprep.subr.mxu0 0.0
        %828 = vmatpush2.msra.mxu0 0.0
        %829 = vmatprep.subr.mxu0 0.0
        %830 = vmatpush2.msra.mxu0 0.0
        %831 = vmatprep.subr.mxu0 0.0
        %832 = vmatpush2.msra.mxu0 0.0
        %833 = vmatprep.subr.mxu0 0.0
        %834 = vmatpush2.msra.mxu0 0.0
        %835 = vmatprep.subr.mxu0 0.0
        %836 = vmatpush2.msra.mxu0 0.0
        %837 = vmatprep.subr.mxu0 0.0
        %838 = vmatpush2.msra.mxu0 0.0
        %839 = vmatprep.subr.mxu0 0.0
        %840 = vmatpush2.msra.mxu0 0.0
        %841 = vmatprep.subr.mxu0 0.0
        %842 = vmatpush2.msra.mxu0 0.0
        %843 = vmatprep.subr.mxu0 0.0
        %844 = vmatpush2.msra.mxu0 0.0
        %845 = vmatprep.subr.mxu0 0.0
        %846 = vmatpush2.msra.mxu0 0.0
        %847 = vmatprep.subr.mxu0 0.0
        %848 = vmatpush2.msra.mxu0 0.0
        %849 = vmatprep.subr.mxu0 0.0
        %850 = vmatpush2.msra.mxu0 0.0
        %851 = vmatprep.subr.mxu0 0.0
        %852 = vmatpush2.msra.mxu0 0.0
        %853 = vmatprep.subr.mxu0 0.0
        %854 = vmatpush2.msra.mxu0 0.0
        %855 = vmatprep.subr.mxu0 0.0
        %856 = vmatpush2.msra.mxu0 0.0
        %857 = vmatprep.mubr.f32.mxu0 0.0
        %858 = vmatmul.mubr.f32.gmra.mxu0 %v791
        %v859 = vpop.f32.mrf.mxu0
        %v860 = vadd.f32 %v787, %v859
        %v861 = vpop.f32.mrf.mxu0
        %862 = vdwg.mxu0
        %v863 = vxor.u32 %v860, 2147483648
        %v864 = vmul.f32 %v863, 1.442695
        %v865 = vpow.pop %v864
        %v866 = vadd.f32 %v865, 1.0
        %v867 = vrcp.pop %v866
        %v868 = vmul.f32 1.0, %v867
        %870 = vrot.lane.b32.xlu0 %v527, 127
        %v871 = vpop.permute.xlu0 %870
        %v873 = vmul.f32 %v868, %v871
        %875 = vset.pattern.permute.xlu0 0
        %876 = vperm.xlu0 %875, %v873
        %v877 = vpop.permute.xlu0 %876
        %v879 = vmul.f32 %v877, %v711
        %v880 = vadd.f32 %v704, %v879
        %v881 = vmul.f32 %v877, %v716
        %v882 = vadd.f32 %v706, %v881
        %v884 = vsel %vm540, %v882, 0
        %v886 = vsel %vm544, %v353, 0
        %888 = vmatprep.subr.mxu0 0.0
        %889 = vmatpush1.msra.mxu0 0.0
        %890 = vmatprep.subr.mxu0 0.0
        %891 = vmatpush1.msra.mxu0 0.0
        %892 = vmatprep.subr.mxu0 0.0
        %893 = vmatpush1.msra.mxu0 0.0
        %894 = vmatprep.subr.mxu0 0.0
        %895 = vmatpush1.msra.mxu0 0.0
        %896 = vmatprep.subr.mxu0 0.0
        %897 = vmatpush1.msra.mxu0 0.0
        %898 = vmatprep.subr.mxu0 0.0
        %899 = vmatpush1.msra.mxu0 0.0
        %900 = vmatprep.subr.mxu0 0.0
        %901 = vmatpush1.msra.mxu0 0.0
        %902 = vmatprep.subr.mxu0 0.0
        %903 = vmatpush1.msra.mxu0 0.0
        %904 = vmatprep.subr.mxu0 0.0
        %905 = vmatpush1.msra.mxu0 0.0
        %906 = vmatprep.subr.mxu0 0.0
        %907 = vmatpush1.msra.mxu0 0.0
        %908 = vmatprep.subr.mxu0 0.0
        %909 = vmatpush1.msra.mxu0 0.0
        %910 = vmatprep.subr.mxu0 0.0
        %911 = vmatpush1.msra.mxu0 0.0
        %912 = vmatprep.subr.mxu0 0.0
        %913 = vmatpush1.msra.mxu0 0.0
        %914 = vmatprep.subr.mxu0 0.0
        %915 = vmatpush1.msra.mxu0 0.0
        %916 = vmatprep.subr.mxu0 0.0
        %917 = vmatpush1.msra.mxu0 0.0
        %918 = vmatprep.subr.mxu0 0.0
        %919 = vmatpush1.msra.mxu0 %v886
        %920 = vmatprep.subr.mxu0 0.0
        %921 = vmatpush2.msra.mxu0 0.0
        %922 = vmatprep.subr.mxu0 0.0
        %923 = vmatpush2.msra.mxu0 0.0
        %924 = vmatprep.subr.mxu0 0.0
        %925 = vmatpush2.msra.mxu0 0.0
        %926 = vmatprep.subr.mxu0 0.0
        %927 = vmatpush2.msra.mxu0 0.0
        %928 = vmatprep.subr.mxu0 0.0
        %929 = vmatpush2.msra.mxu0 0.0
        %930 = vmatprep.subr.mxu0 0.0
        %931 = vmatpush2.msra.mxu0 0.0
        %932 = vmatprep.subr.mxu0 0.0
        %933 = vmatpush2.msra.mxu0 0.0
        %934 = vmatprep.subr.mxu0 0.0
        %935 = vmatpush2.msra.mxu0 0.0
        %936 = vmatprep.subr.mxu0 0.0
        %937 = vmatpush2.msra.mxu0 0.0
        %938 = vmatprep.subr.mxu0 0.0
        %939 = vmatpush2.msra.mxu0 0.0
        %940 = vmatprep.subr.mxu0 0.0
        %941 = vmatpush2.msra.mxu0 0.0
        %942 = vmatprep.subr.mxu0 0.0
        %943 = vmatpush2.msra.mxu0 0.0
        %944 = vmatprep.subr.mxu0 0.0
        %945 = vmatpush2.msra.mxu0 0.0
        %946 = vmatprep.subr.mxu0 0.0
        %947 = vmatpush2.msra.mxu0 0.0
        %948 = vmatprep.subr.mxu0 0.0
        %949 = vmatpush2.msra.mxu0 0.0
        %950 = vmatprep.subr.mxu0 0.0
        %951 = vmatpush2.msra.mxu0 0.0
        %952 = vmatprep.mubr.f32.mxu0 0.0
        %953 = vmatmul.mubr.f32.gmra.mxu0 %v884
        %v954 = vpop.f32.mrf.mxu0
        %v955 = vadd.f32 0.0, %v954
        %v956 = vpop.f32.mrf.mxu0
        %957 = vdwg.mxu0
        %v959 = vsel %vm617, %v880, 0
        %961 = vmatprep.subr.mxu0 0.0
        %962 = vmatpush1.msra.mxu0 0.0
        %963 = vmatprep.subr.mxu0 0.0
        %964 = vmatpush1.msra.mxu0 0.0
        %965 = vmatprep.subr.mxu0 0.0
        %966 = vmatpush1.msra.mxu0 0.0
        %967 = vmatprep.subr.mxu0 0.0
        %968 = vmatpush1.msra.mxu0 0.0
        %969 = vmatprep.subr.mxu0 0.0
        %970 = vmatpush1.msra.mxu0 0.0
        %971 = vmatprep.subr.mxu0 0.0
        %972 = vmatpush1.msra.mxu0 0.0
        %973 = vmatprep.subr.mxu0 0.0
        %974 = vmatpush1.msra.mxu0 0.0
        %975 = vmatprep.subr.mxu0 0.0
        %976 = vmatpush1.msra.mxu0 0.0
        %977 = vmatprep.subr.mxu0 0.0
        %978 = vmatpush1.msra.mxu0 0.0
        %979 = vmatprep.subr.mxu0 0.0
        %980 = vmatpush1.msra.mxu0 0.0
        %981 = vmatprep.subr.mxu0 0.0
        %982 = vmatpush1.msra.mxu0 0.0
        %983 = vmatprep.subr.mxu0 0.0
        %984 = vmatpush1.msra.mxu0 0.0
        %985 = vmatprep.subr.mxu0 0.0
        %986 = vmatpush1.msra.mxu0 0.0
        %987 = vmatprep.subr.mxu0 0.0
        %988 = vmatpush1.msra.mxu0 0.0
        %989 = vmatprep.subr.mxu0 0.0
        %990 = vmatpush1.msra.mxu0 0.0
        %991 = vmatprep.subr.mxu0 0.0
        %992 = vmatpush1.msra.mxu0 %v479
        %993 = vmatprep.subr.mxu0 0.0
        %994 = vmatpush2.msra.mxu0 0.0
        %995 = vmatprep.subr.mxu0 0.0
        %996 = vmatpush2.msra.mxu0 0.0
        %997 = vmatprep.subr.mxu0 0.0
        %998 = vmatpush2.msra.mxu0 0.0
        %999 = vmatprep.subr.mxu0 0.0
        %1000 = vmatpush2.msra.mxu0 0.0
        %1001 = vmatprep.subr.mxu0 0.0
        %1002 = vmatpush2.msra.mxu0 0.0
        %1003 = vmatprep.subr.mxu0 0.0
        %1004 = vmatpush2.msra.mxu0 0.0
        %1005 = vmatprep.subr.mxu0 0.0
        %1006 = vmatpush2.msra.mxu0 0.0
        %1007 = vmatprep.subr.mxu0 0.0
        %1008 = vmatpush2.msra.mxu0 0.0
        %1009 = vmatprep.subr.mxu0 0.0
        %1010 = vmatpush2.msra.mxu0 0.0
        %1011 = vmatprep.subr.mxu0 0.0
        %1012 = vmatpush2.msra.mxu0 0.0
        %1013 = vmatprep.subr.mxu0 0.0
        %1014 = vmatpush2.msra.mxu0 0.0
        %1015 = vmatprep.subr.mxu0 0.0
        %1016 = vmatpush2.msra.mxu0 0.0
        %1017 = vmatprep.subr.mxu0 0.0
        %1018 = vmatpush2.msra.mxu0 0.0
        %1019 = vmatprep.subr.mxu0 0.0
        %1020 = vmatpush2.msra.mxu0 0.0
        %1021 = vmatprep.subr.mxu0 0.0
        %1022 = vmatpush2.msra.mxu0 0.0
        %1023 = vmatprep.subr.mxu0 0.0
        %1024 = vmatpush2.msra.mxu0 0.0
        %1025 = vmatprep.mubr.f32.mxu0 0.0
        %1026 = vmatmul.mubr.f32.gmra.mxu0 %v959
        %v1027 = vpop.f32.mrf.mxu0
        %v1028 = vadd.f32 %v955, %v1027
        %v1029 = vpop.f32.mrf.mxu0
        %1030 = vdwg.mxu0
        %1031 = vset.pattern.permute.xlu0 4
        %1032 = vperm.xlu0 %1031, %v526
        %v1033 = vpop.permute.xlu0 %1032
        %vm1034 = vcmp.eq.s32.totalorder %v1033, %v358
        %v1035 = vsel %vm1034, 1.0, 0.0
        %1036 = vset.pattern.permute.xlu0 6
        %1037 = vperm.xlu0 %1036, %v526
        %v1038 = vpop.permute.xlu0 %1037
        %vm1039 = vcmp.eq.s32.totalorder %v1038, %v358
        %v1040 = vsel %vm1039, 1.0, 0.0
        %v1042 = vcombine.high %v354, %v354
        %v1044 = vsel %vm540, %v1040, 0
        %v1046 = vsel %vm544, %v1042, 0
        %1048 = vmatprep.subr.mxu0 0.0
        %1049 = vmatpush1.msra.mxu0 0.0
        %1050 = vmatprep.subr.mxu0 0.0
        %1051 = vmatpush1.msra.mxu0 0.0
        %1052 = vmatprep.subr.mxu0 0.0
        %1053 = vmatpush1.msra.mxu0 0.0
        %1054 = vmatprep.subr.mxu0 0.0
        %1055 = vmatpush1.msra.mxu0 0.0
        %1056 = vmatprep.subr.mxu0 0.0
        %1057 = vmatpush1.msra.mxu0 0.0
        %1058 = vmatprep.subr.mxu0 0.0
        %1059 = vmatpush1.msra.mxu0 0.0
        %1060 = vmatprep.subr.mxu0 0.0
        %1061 = vmatpush1.msra.mxu0 0.0
        %1062 = vmatprep.subr.mxu0 0.0
        %1063 = vmatpush1.msra.mxu0 0.0
        %1064 = vmatprep.subr.mxu0 0.0
        %1065 = vmatpush1.msra.mxu0 0.0
        %1066 = vmatprep.subr.mxu0 0.0
        %1067 = vmatpush1.msra.mxu0 0.0
        %1068 = vmatprep.subr.mxu0 0.0
        %1069 = vmatpush1.msra.mxu0 0.0
        %1070 = vmatprep.subr.mxu0 0.0
        %1071 = vmatpush1.msra.mxu0 0.0
        %1072 = vmatprep.subr.mxu0 0.0
        %1073 = vmatpush1.msra.mxu0 0.0
        %1074 = vmatprep.subr.mxu0 0.0
        %1075 = vmatpush1.msra.mxu0 0.0
        %1076 = vmatprep.subr.mxu0 0.0
        %1077 = vmatpush1.msra.mxu0 0.0
        %1078 = vmatprep.subr.mxu0 0.0
        %1079 = vmatpush1.msra.mxu0 %v1046
        %1080 = vmatprep.subr.mxu0 0.0
        %1081 = vmatpush2.msra.mxu0 0.0
        %1082 = vmatprep.subr.mxu0 0.0
        %1083 = vmatpush2.msra.mxu0 0.0
        %1084 = vmatprep.subr.mxu0 0.0
        %1085 = vmatpush2.msra.mxu0 0.0
        %1086 = vmatprep.subr.mxu0 0.0
        %1087 = vmatpush2.msra.mxu0 0.0
        %1088 = vmatprep.subr.mxu0 0.0
        %1089 = vmatpush2.msra.mxu0 0.0
        %1090 = vmatprep.subr.mxu0 0.0
        %1091 = vmatpush2.msra.mxu0 0.0
        %1092 = vmatprep.subr.mxu0 0.0
        %1093 = vmatpush2.msra.mxu0 0.0
        %1094 = vmatprep.subr.mxu0 0.0
        %1095 = vmatpush2.msra.mxu0 0.0
        %1096 = vmatprep.subr.mxu0 0.0
        %1097 = vmatpush2.msra.mxu0 0.0
        %1098 = vmatprep.subr.mxu0 0.0
        %1099 = vmatpush2.msra.mxu0 0.0
        %1100 = vmatprep.subr.mxu0 0.0
        %1101 = vmatpush2.msra.mxu0 0.0
        %1102 = vmatprep.subr.mxu0 0.0
        %1103 = vmatpush2.msra.mxu0 0.0
        %1104 = vmatprep.subr.mxu0 0.0
        %1105 = vmatpush2.msra.mxu0 0.0
        %1106 = vmatprep.subr.mxu0 0.0
        %1107 = vmatpush2.msra.mxu0 0.0
        %1108 = vmatprep.subr.mxu0 0.0
        %1109 = vmatpush2.msra.mxu0 0.0
        %1110 = vmatprep.subr.mxu0 0.0
        %1111 = vmatpush2.msra.mxu0 0.0
        %1112 = vmatprep.mubr.f32.mxu0 0.0
        %1113 = vmatmul.mubr.f32.gmra.mxu0 %v1044
        %v1114 = vpop.f32.mrf.mxu0
        %v1115 = vadd.f32 0.0, %v1114
        %v1116 = vpop.f32.mrf.mxu0
        %1117 = vdwg.mxu0
        %1119 = vrot.lane.b32.xlu0 %v522, 127
        %v1120 = vpop.permute.xlu0 %1119
        %v1123 = vsel %vm617, %v1035, 0
        %1125 = vmatprep.subr.mxu0 0.0
        %1126 = vmatpush1.msra.mxu0 0.0
        %1127 = vmatprep.subr.mxu0 0.0
        %1128 = vmatpush1.msra.mxu0 0.0
        %1129 = vmatprep.subr.mxu0 0.0
        %1130 = vmatpush1.msra.mxu0 0.0
        %1131 = vmatprep.subr.mxu0 0.0
        %1132 = vmatpush1.msra.mxu0 0.0
        %1133 = vmatprep.subr.mxu0 0.0
        %1134 = vmatpush1.msra.mxu0 0.0
        %1135 = vmatprep.subr.mxu0 0.0
        %1136 = vmatpush1.msra.mxu0 0.0
        %1137 = vmatprep.subr.mxu0 0.0
        %1138 = vmatpush1.msra.mxu0 0.0
        %1139 = vmatprep.subr.mxu0 0.0
        %1140 = vmatpush1.msra.mxu0 0.0
        %1141 = vmatprep.subr.mxu0 0.0
        %1142 = vmatpush1.msra.mxu0 0.0
        %1143 = vmatprep.subr.mxu0 0.0
        %1144 = vmatpush1.msra.mxu0 0.0
        %1145 = vmatprep.subr.mxu0 0.0
        %1146 = vmatpush1.msra.mxu0 0.0
        %1147 = vmatprep.subr.mxu0 0.0
        %1148 = vmatpush1.msra.mxu0 0.0
        %1149 = vmatprep.subr.mxu0 0.0
        %1150 = vmatpush1.msra.mxu0 0.0
        %1151 = vmatprep.subr.mxu0 0.0
        %1152 = vmatpush1.msra.mxu0 0.0
        %1153 = vmatprep.subr.mxu0 0.0
        %1154 = vmatpush1.msra.mxu0 0.0
        %1155 = vmatprep.subr.mxu0 0.0
        %1156 = vmatpush1.msra.mxu0 %v1120
        %1157 = vmatprep.subr.mxu0 0.0
        %1158 = vmatpush2.msra.mxu0 0.0
        %1159 = vmatprep.subr.mxu0 0.0
        %1160 = vmatpush2.msra.mxu0 0.0
        %1161 = vmatprep.subr.mxu0 0.0
        %1162 = vmatpush2.msra.mxu0 0.0
        %1163 = vmatprep.subr.mxu0 0.0
        %1164 = vmatpush2.msra.mxu0 0.0
        %1165 = vmatprep.subr.mxu0 0.0
        %1166 = vmatpush2.msra.mxu0 0.0
        %1167 = vmatprep.subr.mxu0 0.0
        %1168 = vmatpush2.msra.mxu0 0.0
        %1169 = vmatprep.subr.mxu0 0.0
        %1170 = vmatpush2.msra.mxu0 0.0
        %1171 = vmatprep.subr.mxu0 0.0
        %1172 = vmatpush2.msra.mxu0 0.0
        %1173 = vmatprep.subr.mxu0 0.0
        %1174 = vmatpush2.msra.mxu0 0.0
        %1175 = vmatprep.subr.mxu0 0.0
        %1176 = vmatpush2.msra.mxu0 0.0
        %1177 = vmatprep.subr.mxu0 0.0
        %1178 = vmatpush2.msra.mxu0 0.0
        %1179 = vmatprep.subr.mxu0 0.0
        %1180 = vmatpush2.msra.mxu0 0.0
        %1181 = vmatprep.subr.mxu0 0.0
        %1182 = vmatpush2.msra.mxu0 0.0
        %1183 = vmatprep.subr.mxu0 0.0
        %1184 = vmatpush2.msra.mxu0 0.0
        %1185 = vmatprep.subr.mxu0 0.0
        %1186 = vmatpush2.msra.mxu0 0.0
        %1187 = vmatprep.subr.mxu0 0.0
        %1188 = vmatpush2.msra.mxu0 0.0
        %1189 = vmatprep.mubr.f32.mxu0 0.0
        %1190 = vmatmul.mubr.f32.gmra.mxu0 %v1123
        %v1191 = vpop.f32.mrf.mxu0
        %v1192 = vadd.f32 %v1115, %v1191
        %v1193 = vpop.f32.mrf.mxu0
        %1194 = vdwg.mxu0
        %v1195 = vxor.u32 %v1192, 2147483648
        %v1196 = vmul.f32 %v1195, 1.442695
        %v1197 = vpow.pop %v1196
        %v1198 = vadd.f32 %v1197, 1.0
        %v1199 = vrcp.pop %v1198
        %v1200 = vmul.f32 1.0, %v1199
        %1201 = vrot.lane.b32.xlu0 %v527, 126
        %v1202 = vpop.permute.xlu0 %1201
        %v1204 = vmul.f32 %v1200, %v1202
        %1206 = vset.pattern.permute.xlu0 0
        %1207 = vperm.xlu0 %1206, %v1204
        %v1208 = vpop.permute.xlu0 %1207
        %v1210 = vmul.f32 %v1208, %v1035
        %v1211 = vadd.f32 %v1210, 0.0
        %v1212 = vmul.f32 %v1208, %v1040
        %v1213 = vadd.f32 %v1212, 0.0
        %1214 = vset.pattern.permute.xlu0 5
        %1215 = vperm.xlu0 %1214, %v526
        %v1216 = vpop.permute.xlu0 %1215
        %vm1217 = vcmp.eq.s32.totalorder %v1216, %v358
        %v1218 = vsel %vm1217, 1.0, 0.0
        %1219 = vset.pattern.permute.xlu0 7
        %1220 = vperm.xlu0 %1219, %v526
        %v1221 = vpop.permute.xlu0 %1220
        %vm1222 = vcmp.eq.s32.totalorder %v1221, %v358
        %v1223 = vsel %vm1222, 1.0, 0.0
        %v1225 = vsel %vm540, %v1223, 0
        %1227 = vmatprep.subr.mxu0 0.0
        %1228 = vmatpush1.msra.mxu0 0.0
        %1229 = vmatprep.subr.mxu0 0.0
        %1230 = vmatpush1.msra.mxu0 0.0
        %1231 = vmatprep.subr.mxu0 0.0
        %1232 = vmatpush1.msra.mxu0 0.0
        %1233 = vmatprep.subr.mxu0 0.0
        %1234 = vmatpush1.msra.mxu0 0.0
        %1235 = vmatprep.subr.mxu0 0.0
        %1236 = vmatpush1.msra.mxu0 0.0
        %1237 = vmatprep.subr.mxu0 0.0
        %1238 = vmatpush1.msra.mxu0 0.0
        %1239 = vmatprep.subr.mxu0 0.0
        %1240 = vmatpush1.msra.mxu0 0.0
        %1241 = vmatprep.subr.mxu0 0.0
        %1242 = vmatpush1.msra.mxu0 0.0
        %1243 = vmatprep.subr.mxu0 0.0
        %1244 = vmatpush1.msra.mxu0 0.0
        %1245 = vmatprep.subr.mxu0 0.0
        %1246 = vmatpush1.msra.mxu0 0.0
        %1247 = vmatprep.subr.mxu0 0.0
        %1248 = vmatpush1.msra.mxu0 0.0
        %1249 = vmatprep.subr.mxu0 0.0
        %1250 = vmatpush1.msra.mxu0 0.0
        %1251 = vmatprep.subr.mxu0 0.0
        %1252 = vmatpush1.msra.mxu0 0.0
        %1253 = vmatprep.subr.mxu0 0.0
        %1254 = vmatpush1.msra.mxu0 0.0
        %1255 = vmatprep.subr.mxu0 0.0
        %1256 = vmatpush1.msra.mxu0 0.0
        %1257 = vmatprep.subr.mxu0 0.0
        %1258 = vmatpush1.msra.mxu0 %v1046
        %1259 = vmatprep.subr.mxu0 0.0
        %1260 = vmatpush2.msra.mxu0 0.0
        %1261 = vmatprep.subr.mxu0 0.0
        %1262 = vmatpush2.msra.mxu0 0.0
        %1263 = vmatprep.subr.mxu0 0.0
        %1264 = vmatpush2.msra.mxu0 0.0
        %1265 = vmatprep.subr.mxu0 0.0
        %1266 = vmatpush2.msra.mxu0 0.0
        %1267 = vmatprep.subr.mxu0 0.0
        %1268 = vmatpush2.msra.mxu0 0.0
        %1269 = vmatprep.subr.mxu0 0.0
        %1270 = vmatpush2.msra.mxu0 0.0
        %1271 = vmatprep.subr.mxu0 0.0
        %1272 = vmatpush2.msra.mxu0 0.0
        %1273 = vmatprep.subr.mxu0 0.0
        %1274 = vmatpush2.msra.mxu0 0.0
        %1275 = vmatprep.subr.mxu0 0.0
        %1276 = vmatpush2.msra.mxu0 0.0
        %1277 = vmatprep.subr.mxu0 0.0
        %1278 = vmatpush2.msra.mxu0 0.0
        %1279 = vmatprep.subr.mxu0 0.0
        %1280 = vmatpush2.msra.mxu0 0.0
        %1281 = vmatprep.subr.mxu0 0.0
        %1282 = vmatpush2.msra.mxu0 0.0
        %1283 = vmatprep.subr.mxu0 0.0
        %1284 = vmatpush2.msra.mxu0 0.0
        %1285 = vmatprep.subr.mxu0 0.0
        %1286 = vmatpush2.msra.mxu0 0.0
        %1287 = vmatprep.subr.mxu0 0.0
        %1288 = vmatpush2.msra.mxu0 0.0
        %1289 = vmatprep.subr.mxu0 0.0
        %1290 = vmatpush2.msra.mxu0 0.0
        %1291 = vmatprep.mubr.f32.mxu0 0.0
        %1292 = vmatmul.mubr.f32.gmra.mxu0 %v1225
        %v1293 = vpop.f32.mrf.mxu0
        %v1294 = vadd.f32 0.0, %v1293
        %v1295 = vpop.f32.mrf.mxu0
        %1296 = vdwg.mxu0
        %v1298 = vsel %vm617, %v1218, 0
        %1300 = vmatprep.subr.mxu0 0.0
        %1301 = vmatpush1.msra.mxu0 0.0
        %1302 = vmatprep.subr.mxu0 0.0
        %1303 = vmatpush1.msra.mxu0 0.0
        %1304 = vmatprep.subr.mxu0 0.0
        %1305 = vmatpush1.msra.mxu0 0.0
        %1306 = vmatprep.subr.mxu0 0.0
        %1307 = vmatpush1.msra.mxu0 0.0
        %1308 = vmatprep.subr.mxu0 0.0
        %1309 = vmatpush1.msra.mxu0 0.0
        %1310 = vmatprep.subr.mxu0 0.0
        %1311 = vmatpush1.msra.mxu0 0.0
        %1312 = vmatprep.subr.mxu0 0.0
        %1313 = vmatpush1.msra.mxu0 0.0
        %1314 = vmatprep.subr.mxu0 0.0
        %1315 = vmatpush1.msra.mxu0 0.0
        %1316 = vmatprep.subr.mxu0 0.0
        %1317 = vmatpush1.msra.mxu0 0.0
        %1318 = vmatprep.subr.mxu0 0.0
        %1319 = vmatpush1.msra.mxu0 0.0
        %1320 = vmatprep.subr.mxu0 0.0
        %1321 = vmatpush1.msra.mxu0 0.0
        %1322 = vmatprep.subr.mxu0 0.0
        %1323 = vmatpush1.msra.mxu0 0.0
        %1324 = vmatprep.subr.mxu0 0.0
        %1325 = vmatpush1.msra.mxu0 0.0
        %1326 = vmatprep.subr.mxu0 0.0
        %1327 = vmatpush1.msra.mxu0 0.0
        %1328 = vmatprep.subr.mxu0 0.0
        %1329 = vmatpush1.msra.mxu0 0.0
        %1330 = vmatprep.subr.mxu0 0.0
        %1331 = vmatpush1.msra.mxu0 %v1120
        %1332 = vmatprep.subr.mxu0 0.0
        %1333 = vmatpush2.msra.mxu0 0.0
        %1334 = vmatprep.subr.mxu0 0.0
        %1335 = vmatpush2.msra.mxu0 0.0
        %1336 = vmatprep.subr.mxu0 0.0
        %1337 = vmatpush2.msra.mxu0 0.0
        %1338 = vmatprep.subr.mxu0 0.0
        %1339 = vmatpush2.msra.mxu0 0.0
        %1340 = vmatprep.subr.mxu0 0.0
        %1341 = vmatpush2.msra.mxu0 0.0
        %1342 = vmatprep.subr.mxu0 0.0
        %1343 = vmatpush2.msra.mxu0 0.0
        %1344 = vmatprep.subr.mxu0 0.0
        %1345 = vmatpush2.msra.mxu0 0.0
        %1346 = vmatprep.subr.mxu0 0.0
        %1347 = vmatpush2.msra.mxu0 0.0
        %1348 = vmatprep.subr.mxu0 0.0
        %1349 = vmatpush2.msra.mxu0 0.0
        %1350 = vmatprep.subr.mxu0 0.0
        %1351 = vmatpush2.msra.mxu0 0.0
        %1352 = vmatprep.subr.mxu0 0.0
        %1353 = vmatpush2.msra.mxu0 0.0
        %1354 = vmatprep.subr.mxu0 0.0
        %1355 = vmatpush2.msra.mxu0 0.0
        %1356 = vmatprep.subr.mxu0 0.0
        %1357 = vmatpush2.msra.mxu0 0.0
        %1358 = vmatprep.subr.mxu0 0.0
        %1359 = vmatpush2.msra.mxu0 0.0
        %1360 = vmatprep.subr.mxu0 0.0
        %1361 = vmatpush2.msra.mxu0 0.0
        %1362 = vmatprep.subr.mxu0 0.0
        %1363 = vmatpush2.msra.mxu0 0.0
        %1364 = vmatprep.mubr.f32.mxu0 0.0
        %1365 = vmatmul.mubr.f32.gmra.mxu0 %v1298
        %v1366 = vpop.f32.mrf.mxu0
        %v1367 = vadd.f32 %v1294, %v1366
        %v1368 = vpop.f32.mrf.mxu0
        %1369 = vdwg.mxu0
        %v1370 = vxor.u32 %v1367, 2147483648
        %v1371 = vmul.f32 %v1370, 1.442695
        %v1372 = vpow.pop %v1371
        %v1373 = vadd.f32 %v1372, 1.0
        %v1374 = vrcp.pop %v1373
        %v1375 = vmul.f32 1.0, %v1374
        %1376 = vrot.lane.b32.xlu0 %v527, 125
        %v1377 = vpop.permute.xlu0 %1376
        %v1379 = vmul.f32 %v1375, %v1377
        %1381 = vset.pattern.permute.xlu0 0
        %1382 = vperm.xlu0 %1381, %v1379
        %v1383 = vpop.permute.xlu0 %1382
        %v1385 = vmul.f32 %v1383, %v1218
        %v1386 = vadd.f32 %v1211, %v1385
        %v1387 = vmul.f32 %v1383, %v1223
        %v1388 = vadd.f32 %v1213, %v1387
        %v1390 = vsel %vm540, %v1388, 0
        %v1392 = vsel %vm544, %v354, 0
        %1394 = vmatprep.subr.mxu0 0.0
        %1395 = vmatpush1.msra.mxu0 0.0
        %1396 = vmatprep.subr.mxu0 0.0
        %1397 = vmatpush1.msra.mxu0 0.0
        %1398 = vmatprep.subr.mxu0 0.0
        %1399 = vmatpush1.msra.mxu0 0.0
        %1400 = vmatprep.subr.mxu0 0.0
        %1401 = vmatpush1.msra.mxu0 0.0
        %1402 = vmatprep.subr.mxu0 0.0
        %1403 = vmatpush1.msra.mxu0 0.0
        %1404 = vmatprep.subr.mxu0 0.0
        %1405 = vmatpush1.msra.mxu0 0.0
        %1406 = vmatprep.subr.mxu0 0.0
        %1407 = vmatpush1.msra.mxu0 0.0
        %1408 = vmatprep.subr.mxu0 0.0
        %1409 = vmatpush1.msra.mxu0 0.0
        %1410 = vmatprep.subr.mxu0 0.0
        %1411 = vmatpush1.msra.mxu0 0.0
        %1412 = vmatprep.subr.mxu0 0.0
        %1413 = vmatpush1.msra.mxu0 0.0
        %1414 = vmatprep.subr.mxu0 0.0
        %1415 = vmatpush1.msra.mxu0 0.0
        %1416 = vmatprep.subr.mxu0 0.0
        %1417 = vmatpush1.msra.mxu0 0.0
        %1418 = vmatprep.subr.mxu0 0.0
        %1419 = vmatpush1.msra.mxu0 0.0
        %1420 = vmatprep.subr.mxu0 0.0
        %1421 = vmatpush1.msra.mxu0 0.0
        %1422 = vmatprep.subr.mxu0 0.0
        %1423 = vmatpush1.msra.mxu0 0.0
        %1424 = vmatprep.subr.mxu0 0.0
        %1425 = vmatpush1.msra.mxu0 %v1392
        %1426 = vmatprep.subr.mxu0 0.0
        %1427 = vmatpush2.msra.mxu0 0.0
        %1428 = vmatprep.subr.mxu0 0.0
        %1429 = vmatpush2.msra.mxu0 0.0
        %1430 = vmatprep.subr.mxu0 0.0
        %1431 = vmatpush2.msra.mxu0 0.0
        %1432 = vmatprep.subr.mxu0 0.0
        %1433 = vmatpush2.msra.mxu0 0.0
        %1434 = vmatprep.subr.mxu0 0.0
        %1435 = vmatpush2.msra.mxu0 0.0
        %1436 = vmatprep.subr.mxu0 0.0
        %1437 = vmatpush2.msra.mxu0 0.0
        %1438 = vmatprep.subr.mxu0 0.0
        %1439 = vmatpush2.msra.mxu0 0.0
        %1440 = vmatprep.subr.mxu0 0.0
        %1441 = vmatpush2.msra.mxu0 0.0
        %1442 = vmatprep.subr.mxu0 0.0
        %1443 = vmatpush2.msra.mxu0 0.0
        %1444 = vmatprep.subr.mxu0 0.0
        %1445 = vmatpush2.msra.mxu0 0.0
        %1446 = vmatprep.subr.mxu0 0.0
        %1447 = vmatpush2.msra.mxu0 0.0
        %1448 = vmatprep.subr.mxu0 0.0
        %1449 = vmatpush2.msra.mxu0 0.0
        %1450 = vmatprep.subr.mxu0 0.0
        %1451 = vmatpush2.msra.mxu0 0.0
        %1452 = vmatprep.subr.mxu0 0.0
        %1453 = vmatpush2.msra.mxu0 0.0
        %1454 = vmatprep.subr.mxu0 0.0
        %1455 = vmatpush2.msra.mxu0 0.0
        %1456 = vmatprep.subr.mxu0 0.0
        %1457 = vmatpush2.msra.mxu0 0.0
        %1458 = vmatprep.mubr.f32.mxu0 0.0
        %1459 = vmatmul.mubr.f32.gmra.mxu0 %v1390
        %v1460 = vpop.f32.mrf.mxu0
        %v1461 = vadd.f32 0.0, %v1460
        %v1462 = vpop.f32.mrf.mxu0
        %1463 = vdwg.mxu0
        %v1465 = vsel %vm617, %v1386, 0
        %1467 = vmatprep.subr.mxu0 0.0
        %1468 = vmatpush1.msra.mxu0 0.0
        %1469 = vmatprep.subr.mxu0 0.0
        %1470 = vmatpush1.msra.mxu0 0.0
        %1471 = vmatprep.subr.mxu0 0.0
        %1472 = vmatpush1.msra.mxu0 0.0
        %1473 = vmatprep.subr.mxu0 0.0
        %1474 = vmatpush1.msra.mxu0 0.0
        %1475 = vmatprep.subr.mxu0 0.0
        %1476 = vmatpush1.msra.mxu0 0.0
        %1477 = vmatprep.subr.mxu0 0.0
        %1478 = vmatpush1.msra.mxu0 0.0
        %1479 = vmatprep.subr.mxu0 0.0
        %1480 = vmatpush1.msra.mxu0 0.0
        %1481 = vmatprep.subr.mxu0 0.0
        %1482 = vmatpush1.msra.mxu0 0.0
        %1483 = vmatprep.subr.mxu0 0.0
        %1484 = vmatpush1.msra.mxu0 0.0
        %1485 = vmatprep.subr.mxu0 0.0
        %1486 = vmatpush1.msra.mxu0 0.0
        %1487 = vmatprep.subr.mxu0 0.0
        %1488 = vmatpush1.msra.mxu0 0.0
        %1489 = vmatprep.subr.mxu0 0.0
        %1490 = vmatpush1.msra.mxu0 0.0
        %1491 = vmatprep.subr.mxu0 0.0
        %1492 = vmatpush1.msra.mxu0 0.0
        %1493 = vmatprep.subr.mxu0 0.0
        %1494 = vmatpush1.msra.mxu0 0.0
        %1495 = vmatprep.subr.mxu0 0.0
        %1496 = vmatpush1.msra.mxu0 0.0
        %1497 = vmatprep.subr.mxu0 0.0
        %1498 = vmatpush1.msra.mxu0 %v481
        %1499 = vmatprep.subr.mxu0 0.0
        %1500 = vmatpush2.msra.mxu0 0.0
        %1501 = vmatprep.subr.mxu0 0.0
        %1502 = vmatpush2.msra.mxu0 0.0
        %1503 = vmatprep.subr.mxu0 0.0
        %1504 = vmatpush2.msra.mxu0 0.0
        %1505 = vmatprep.subr.mxu0 0.0
        %1506 = vmatpush2.msra.mxu0 0.0
        %1507 = vmatprep.subr.mxu0 0.0
        %1508 = vmatpush2.msra.mxu0 0.0
        %1509 = vmatprep.subr.mxu0 0.0
        %1510 = vmatpush2.msra.mxu0 0.0
        %1511 = vmatprep.subr.mxu0 0.0
        %1512 = vmatpush2.msra.mxu0 0.0
        %1513 = vmatprep.subr.mxu0 0.0
        %1514 = vmatpush2.msra.mxu0 0.0
        %1515 = vmatprep.subr.mxu0 0.0
        %1516 = vmatpush2.msra.mxu0 0.0
        %1517 = vmatprep.subr.mxu0 0.0
        %1518 = vmatpush2.msra.mxu0 0.0
        %1519 = vmatprep.subr.mxu0 0.0
        %1520 = vmatpush2.msra.mxu0 0.0
        %1521 = vmatprep.subr.mxu0 0.0
        %1522 = vmatpush2.msra.mxu0 0.0
        %1523 = vmatprep.subr.mxu0 0.0
        %1524 = vmatpush2.msra.mxu0 0.0
        %1525 = vmatprep.subr.mxu0 0.0
        %1526 = vmatpush2.msra.mxu0 0.0
        %1527 = vmatprep.subr.mxu0 0.0
        %1528 = vmatpush2.msra.mxu0 0.0
        %1529 = vmatprep.subr.mxu0 0.0
        %1530 = vmatpush2.msra.mxu0 0.0
        %1531 = vmatprep.mubr.f32.mxu0 0.0
        %1532 = vmatmul.mubr.f32.gmra.mxu0 %v1465
        %v1533 = vpop.f32.mrf.mxu0
        %v1534 = vadd.f32 %v1461, %v1533
        %v1535 = vpop.f32.mrf.mxu0
        %1536 = vdwg.mxu0
        %v1537 = vadd.f32 %v1028, %v1534
        %v1538 = vxor.u32 %v522, 2147483648
        %v1539 = vmul.f32 %v1538, 1.442695
        %v1540 = vpow.pop %v1539
        %v1541 = vadd.f32 %v1540, 1.0
        %v1542 = vrcp.pop %v1541
        %v1543 = vmul.f32 1.0, %v1542
        %v1544 = vmul.f32 %v1543, %v1202
        %1546 = vset.pattern.permute.xlu0 2
        %1547 = vperm.xlu0 %1546, %v1544
        %v1548 = vpop.permute.xlu0 %1547
        %v1550 = vmul.f32 %v1548, %v520
        %v1551 = vadd.f32 %v1537, %v1550
        %1552 = vadd.xlane.f32.xlu0 %v1551
        %v1553 = vpop.xlane.xlu0 %1552
        %v1554 = vrcp.pop 128.0
        %v1555 = vmul.f32 %v1553, %v1554
        %v1556 = vsub.f32 %v1551, %v1555
        %v1557 = vmul.f32 %v1556, %v1556
        %1558 = vadd.xlane.f32.xlu0 %v1557
        %v1559 = vpop.xlane.xlu0 %1558
        %v1560 = vmul.f32 %v1559, %v1554
        %v1561 = vadd.f32 %v1560, 1e-05
        %v1562 = vrsqrt.pop %v1561
        %v1563 = vmul.f32 %v1556, %v1562
        %v1564 = vlaneseq
        %v1565 = vshrl.u32 %v1564, 7
        %v1566 = vsub.s32 0, %v1565
        %v1567 = vrot.slane %v355, %v1566
        %v1568 = vmul.f32 %v1563, %v1567
        %v1569 = vlaneseq
        %v1570 = vshrl.u32 %v1569, 7
        %v1571 = vsub.s32 0, %v1570
        %v1572 = vrot.slane %v356, %v1571
        %v1573 = vadd.f32 %v1568, %v1572
        %1574 = vset.pattern.permute.xlu0 5
        %1575 = vperm.xlu0 %1574, %v527
        %v1576 = vpop.permute.xlu0 %1575
        %v1578 = vmul.f32 %v1573, %v1576
        %v1579 = vmax.f32 %v1578, 0.0
        %v1580 = vmul.f32 %v1579, %v1576
        %1581 = vst [vmem:[%s323] sm:$0xff] %v1580
        %s1582 = sand.u32 %s193, 1
        %s1583 = scalar_lea.sflag [#allocation4], %s1582
        %s1584 = sand.u32 %s193, 1
        %s1585 = smul.addr %s1584, 8
        %s1586 = scalar_lea.vmem [#allocation7], %s1585
        // Predicated region
        $region57: #{tpu_custom_call.1} parent=47 // pred_check
          %p1587 = pneg %p203
        $region58: #{tpu_custom_call.1} parent=47 // pred_check_branch
          %1589 = sbr.rel (%p1587) target = $region60
        $region59: #{tpu_custom_call.1} parent=47 // pred_region
          %s1591 = ssub.s32 128, 128
          %1592 = vsyncadd %s1583, %s1591
          %s1593 = smul.addr %s23, 128
          %s1594 = scalar_lea.hbm %s7, %s1593
          %s1596 = sshll.u32 %s1586, 4
          %s1597 = int_to_ptr.vmem [resolvable:$true] %s1596
          %1599 = dma.vmem_to_hbm [thread:$0]  %s1597, 128, %s1594, %s1583
        $region60: #{tpu_custom_call.1} parent=47 // pred_fallthru
          _
      $region48: #{tpu_custom_call.1} parent=5 // pred_fallthru
        _
      %p1600 = scmp.le.s32.totalorder 2, %s18
      // Predicated region
      $region61: #{tpu_custom_call.1} parent=5 // pred_check
        %p1601 = pneg %p1600
      $region62: #{tpu_custom_call.1} parent=5 // pred_check_branch
        %1603 = sbr.rel (%p1601) target = $region64
      $region63: #{tpu_custom_call.1} parent=5 // pred_region
        %s1604 = ssub.s32 %s18, 2
        // Predicated region
        $region65: #{tpu_custom_call.1} parent=63 // pred_check
          %p1605 = pneg %p209
        $region66: #{tpu_custom_call.1} parent=63 // pred_check_branch
          %1607 = sbr.rel (%p1605) target = $region68
        $region67: #{tpu_custom_call.1} parent=63 // pred_region
          %s1608 = sand.u32 %s194, 1
          %s1609 = scalar_lea.sflag [#allocation4], %s1608
          %s1610 = sand.u32 %s194, 1
          %s1611 = smul.addr %s1610, 8
          %s1612 = scalar_lea.vmem [#allocation7], %s1611
          %1613 = dma.done %s1609, 128
        $region68: #{tpu_custom_call.1} parent=63 // pred_fallthru
          _
      $region64: #{tpu_custom_call.1} parent=5 // pred_fallthru
        _
    $region6: #{tpu_custom_call.1} parent=1 // loop_footer
      %s22 = sadd.s32 1, %s18
    $region7: #{tpu_custom_call.1} parent=1 // loop_footer_branch
      %17 = sbr.rel target = $region3
    $region8: #{tpu_custom_call.1} parent=1 // loop_exit
      _
    %1614 = vsyncpa [#allocation3], 1
    %s1615 = scalar_lea.sflag [#allocation3], 1
    %1616 = vsyncpa %s1615, 1
    %1617 = vsyncpa [#allocation6], 1
    %1618 = vsyncpa [#allocation4], 1
    %s1619 = scalar_lea.sflag [#allocation4], 1
    %1620 = vsyncpa %s1619, 1

</llo_original>
